<compile_context>
chip_gen: v7x
topology: tpu7x:2x2x1
jax: 0.10.0
libtpu: 0.0.40
codegen_flags: <defaults>
</compile_context>

<pallas_src>
import jax
import jax.numpy as jnp
from jax import lax
from jax.experimental import pallas as pl
from jax.experimental.pallas import tpu as pltpu


def _round_up(n, m):
    return ((n + m - 1) // m) * m


def _round_down(n, m):
    return (n // m) * m


def _pick_tb(B):
    """Batch tile: multiple of 128 (lane-dense out block), <= B, grid >= 2
    once B is big enough so both v7x TensorCores are used; capped at 4096."""
    if B >= 512:
        return min(4096, _round_up((B + 1) // 2, 128))
    return max(128, _round_down(B, 128))


def _dis_embed_att_kernel(x_ref, w1_ref, b1_ref, w2_ref, b2_ref, o_ref):
    # x_ref : (TB, Din)      current batch tile (streams, double-buffered)
    # w1_ref: (nhF, Din)     fc1 weight (torch layout), VMEM-resident
    # b1_ref: (nhF, 1)       fc1 bias as a column, VMEM-resident
    # w2_ref: (nhF, 1)       fc2 weight as a column, VMEM-resident
    # b2_ref: (1, 1) SMEM    fc2 bias scalar
    # o_ref : (1, TB)        lane-dense output row (batch along lanes)

    # fc1 computed transposed so the per-sample axis lands on lanes:
    #   hT[f, b] = sum_d W1[f, d] * x[b, d]
    hT = lax.dot_general(
        w1_ref[...], x_ref[...],
        dimension_numbers=(((1,), (1,)), ((), ())),
        preferred_element_type=jnp.float32,
    )                                                   # (nhF, TB), f32 acc
    hT = hT + b1_ref[...]                               # broadcast over lanes
    hT = jnp.maximum(hT, 0.2 * hT)                      # LeakyReLU(0.2), 2 VALU ops

    # fc2: per-sample dot with w2 -> VPU multiply + cross-sublane reduce (XLU)
    out = jnp.sum(hT * w2_ref[...], axis=0, keepdims=True)   # (1, TB)
    out = out + b2_ref[0, 0]                                  # scalar bias (SMEM)
    o_ref[...] = out.astype(o_ref.dtype)


def _dis_embed_att_pallas(x, w1, b1, w2, b2, *, tb=None):
    B, d_in = x.shape
    nhF = w1.shape[0]

    if tb is None:
        tb = _pick_tb(B)
    # defensive clamp: tile must be a multiple of 128 and never exceed B
    tb = max(128, min(tb, _round_down(B, 128)))
    tb = _round_down(tb, 128)
    grid_b = pl.cdiv(B, tb)          # final block may be partial: no jnp.pad

    w1_c = w1.astype(x.dtype)                                # bf16 x => bf16 MXU feed
    b1_col = b1.reshape(nhF, 1).astype(jnp.float32)
    w2_col = w2.reshape(nhF, 1).astype(jnp.float32)
    b2_smem = jnp.asarray(b2, dtype=jnp.float32).reshape(1, 1)

    out_row = pl.pallas_call(
        _dis_embed_att_kernel,
        out_shape=jax.ShapeDtypeStruct((1, B), jnp.float32),
        grid=(grid_b,),
        in_specs=[
            pl.BlockSpec((tb, d_in), lambda i: (i, 0)),          # x tile streams
            pl.BlockSpec((nhF, d_in), lambda i: (0, 0)),         # W1 resident
            pl.BlockSpec((nhF, 1), lambda i: (0, 0)),            # b1 resident
            pl.BlockSpec((nhF, 1), lambda i: (0, 0)),            # w2 resident
            pl.BlockSpec(memory_space=pltpu.MemorySpace.SMEM),   # b2 scalar
        ],
        out_specs=pl.BlockSpec((1, tb), lambda i: (0, i)),       # lane-dense row
        compiler_params=pltpu.CompilerParams(
            dimension_semantics=("parallel",),                   # v7x: 2 TCs
        ),
    )(x, w1_c, b1_col, w2_col, b2_smem)

    # (1, B) lane-dense kernel output -> (B, 1) module output (free reshape).
    return out_row.reshape(B, 1)


def dis_embed_att_forward(x, w1, b1, w2, b2, *, tb=None, min_pallas_batch=256):
    """x: (B, Din); w1: (nhF, Din); b1: (nhF,); w2: (nhF,); b2: scalar ()."""
    B = x.shape[0]
    if B < min_pallas_batch:
        # Tiny batches: XLA's fused matmul beats any custom kernel here.
        h = jnp.dot(x, w1.T) + b1[None, :]
        h = jnp.maximum(h, 0.2 * h)
        return (jnp.dot(h, w2.reshape(-1, 1)) + b2).astype(jnp.float32)
    return _dis_embed_att_pallas(x, w1, b1, w2, b2, tb=tb)


if __name__ == "__main__":
    # opt.embedSize = 32, opt.attSize = 32, opt.nhF = 128
    embed_size, att_size, nhF = 32, 32, 128
    d_in = embed_size + att_size
    batch = 2500  # exercises multi-step grid + partial (non-divisible) last block

    key = jax.random.PRNGKey(0)
    k_x, k_w1, k_w2 = jax.random.split(key, 3)

    x = jax.random.normal(k_x, (batch, d_in), dtype=jnp.float32)
    # weights_init: Linear weights ~ N(0, 0.02), biases = 0 (torch layout)
    w1 = 0.02 * jax.random.normal(k_w1, (nhF, d_in), dtype=jnp.float32)
    b1 = jnp.zeros((nhF,), dtype=jnp.float32)
    w2 = 0.02 * jax.random.normal(k_w2, (nhF,), dtype=jnp.float32)
    b2 = jnp.zeros((), dtype=jnp.float32)

    fwd = jax.jit(dis_embed_att_forward)
    out = fwd(x, w1, b1, w2, b2)          # Pallas path (B >= 256)
    jax.block_until_ready(out)

    # plain-JAX reference
    h_ref = x @ w1.T + b1[None, :]
    h_ref = jnp.where(h_ref > 0, h_ref, 0.2 * h_ref)
    ref = h_ref @ w2[:, None] + b2

    assert out.shape == (batch, 1)
    assert jnp.allclose(out, ref, atol=1e-4, rtol=1e-4)

    # tiny-batch dispatch (XLA fallback) sanity check
    out_small = jax.jit(dis_embed_att_forward)(x[:8], w1, b1, w2, b2)
    jax.block_until_ready(out_small)
    assert out_small.shape == (8, 1)
    assert jnp.allclose(out_small, ref[:8], atol=1e-4, rtol=1e-4)

    print("KERNEL_OK")
</pallas_src>

<mosaic_0001>
module attributes {stable_mosaic.version = 11 : i64} {
  func.func @_dis_embed_att_kernel(%arg0: i32, %arg1: memref<1280x64xf32, #tpu.memory_space<vmem>>, %arg2: memref<128x64xf32, #tpu.memory_space<vmem>>, %arg3: memref<128x1xf32, #tpu.memory_space<vmem>>, %arg4: memref<128x1xf32, #tpu.memory_space<vmem>>, %arg5: memref<1x1xf32, #tpu.memory_space<smem>>, %arg6: memref<1x1280xf32, #tpu.memory_space<vmem>>) attributes {dimension_semantics = [#tpu.dimension_semantics<parallel>], iteration_bounds = array<i64: 2>, scalar_prefetch = 0 : i64, scratch_operands = 0 : i64, tpu.core_type = #tpu.core_type<tc>, window_params = [{transform_indices = @transform_0, window_bounds = array<i64: 1280, 64>}, {pipeline_mode = #tpu.pipeline_mode<synchronous>, transform_indices = @transform_1, window_bounds = array<i64: 128, 64>}, {pipeline_mode = #tpu.pipeline_mode<synchronous>, transform_indices = @transform_2, window_bounds = array<i64: 128, 1>}, {pipeline_mode = #tpu.pipeline_mode<synchronous>, transform_indices = @transform_3, window_bounds = array<i64: 128, 1>}, {transform_indices = @transform_4, window_bounds = array<i64: 1, 1>}, {transform_indices = @transform_5, window_bounds = array<i64: 1, 1280>}]} {
    %c0 = arith.constant 0 : index
    %c0_0 = arith.constant 0 : index
    %0 = vector.load %arg2[%c0, %c0_0] : memref<128x64xf32, #tpu.memory_space<vmem>>, vector<128x64xf32>
    %c0_1 = arith.constant 0 : index
    %c0_2 = arith.constant 0 : index
    %1 = vector.load %arg1[%c0_1, %c0_2] : memref<1280x64xf32, #tpu.memory_space<vmem>>, vector<1280x64xf32>
    %cst = arith.constant dense<0.000000e+00> : vector<128x1280xf32>
    %2 = tpu.matmul %0, %1, %cst {dimension_numbers = #tpu.dot_dimension_numbers<[1], [1], [0], [0], [0, 0, 1, 0], [], []>} : vector<128x64xf32>, vector<1280x64xf32>, vector<128x1280xf32> -> vector<128x1280xf32>
    %c0_3 = arith.constant 0 : index
    %c0_4 = arith.constant 0 : index
    %3 = vector.load %arg3[%c0_3, %c0_4] : memref<128x1xf32, #tpu.memory_space<vmem>>, vector<128x1xf32>
    %4 = vector.broadcast %3 : vector<128x1xf32> to vector<128x1280xf32>
    %5 = arith.addf %2, %4 : vector<128x1280xf32>
    %cst_5 = arith.constant 2.000000e-01 : f32
    %6 = vector.broadcast %cst_5 : f32 to vector<128x1280xf32>
    %7 = arith.mulf %6, %5 : vector<128x1280xf32>
    %8 = arith.maximumf %5, %7 : vector<128x1280xf32>
    %c0_6 = arith.constant 0 : index
    %c0_7 = arith.constant 0 : index
    %9 = vector.load %arg4[%c0_6, %c0_7] : memref<128x1xf32, #tpu.memory_space<vmem>>, vector<128x1xf32>
    %10 = vector.broadcast %9 : vector<128x1xf32> to vector<128x1280xf32>
    %11 = arith.mulf %8, %10 : vector<128x1280xf32>
    %cst_8 = arith.constant dense<0.000000e+00> : vector<1280xf32>
    %12 = vector.multi_reduction <add>, %11, %cst_8 [0] : vector<128x1280xf32> to vector<1280xf32>
    %13 = vector.shape_cast %12 : vector<1280xf32> to vector<1x1280xf32>
    %c0_9 = arith.constant 0 : index
    %c0_10 = arith.constant 0 : index
    %14 = memref.load %arg5[%c0_9, %c0_10] : memref<1x1xf32, #tpu.memory_space<smem>>
    %15 = vector.broadcast %14 : f32 to vector<1x1280xf32>
    %16 = arith.addf %13, %15 : vector<1x1280xf32>
    %c0_11 = arith.constant 0 : index
    %c0_12 = arith.constant 0 : index
    %17 = vector.load %arg6[%c0_11, %c0_12] : memref<1x1280xf32, #tpu.memory_space<vmem>>, vector<1x1280xf32>
    tpu.vector_store %arg6[%c0_11, %c0_12], %16 {strides = array<i32>} : memref<1x1280xf32, #tpu.memory_space<vmem>>, vector<1x1280xf32>,
    return
  }
  func.func @transform_0(%arg0: i32) -> (i32, i32) {
    %c0_i32 = arith.constant 0 : i32
    %c0_i32_0 = arith.constant 0 : i32
    return %arg0, %c0_i32 : i32, i32
  }
  func.func @transform_1(%arg0: i32) -> (i32, i32) {
    %c0_i32 = arith.constant 0 : i32
    %c0_i32_0 = arith.constant 0 : i32
    %c0_i32_1 = arith.constant 0 : i32
    return %c0_i32, %c0_i32_0 : i32, i32
  }
  func.func @transform_2(%arg0: i32) -> (i32, i32) {
    %c0_i32 = arith.constant 0 : i32
    %c0_i32_0 = arith.constant 0 : i32
    %c0_i32_1 = arith.constant 0 : i32
    return %c0_i32, %c0_i32_0 : i32, i32
  }
  func.func @transform_3(%arg0: i32) -> (i32, i32) {
    %c0_i32 = arith.constant 0 : i32
    %c0_i32_0 = arith.constant 0 : i32
    %c0_i32_1 = arith.constant 0 : i32
    return %c0_i32, %c0_i32_0 : i32, i32
  }
  func.func @transform_4(%arg0: i32) -> (i32, i32) {
    %c0_i32 = arith.constant 0 : i32
    %c0_i32_0 = arith.constant 0 : i32
    %c0_i32_1 = arith.constant 0 : i32
    return %c0_i32, %c0_i32_0 : i32, i32
  }
  func.func @transform_5(%arg0: i32) -> (i32, i32) {
    %c0_i32 = arith.constant 0 : i32
    %c0_i32_0 = arith.constant 0 : i32
    return %c0_i32, %arg0 : i32, i32
  }
}

</mosaic_0001>

<llo_original>
// kernel: dis_embed_att_forward.1
$region0: #{dis_embed_att_forward.1}
  #allocation0 [shape = 'u32[]', space=smem, size = 0x4, offset = 0x4, fixed_abs, tag = 'smem constant byte address 0x4 - core index']
  #allocation1 [shape = 'u32[144,128]{1,0:T(1,128)}', space=vmem, size = 0x12000, scoped, tag = 'internal scratch']
  #allocation2 [shape = 'f32[1,1]{1,0:T(1,128)S(6)}', space=smem, size = 0x200, scoped, tag = 'scoped memory for dis_embed_att_forward.1']
  %s0 = inlined_call_operand.vmem [shape: f32[2500,64], index: 0, kind: input, shape index: {}]
  %s1 = inlined_call_operand.vmem [shape: f32[128,64], index: 1, kind: input, shape index: {}]
  %s2 = inlined_call_operand.vmem [shape: f32[128,1], index: 2, kind: input, shape index: {}]
  %s3 = inlined_call_operand.vmem [shape: f32[128,1], index: 3, kind: input, shape index: {}]
  %s4 = inlined_call_operand.<no memory space> [shape: f32[1,1], index: 4, kind: input, shape index: {}]
  %s5 = inlined_call_operand.hbm [shape: f32[1,2500], index: 5, kind: output, shape index: {}]
  %s6 = sld [smem:[#allocation0]]
  $region53: #{dis_embed_att_forward.1} parent=0
    _
  %s8 = ssub.s32 1, %s6
  %s9 = scalar_select 0, %s8, %s6
  %10 = sst [smem:[#allocation2]] %s4
  $region1: #{dis_embed_att_forward.1} parent=0
    #allocation3 [shape = 'u8[10240]{0}', space=vmem, size = 0x2800, scoped, tag = 'output window, operand 0']
    #allocation4 [shape = 's32[2]{0}', space=sflag, size = 0x8, scoped, tag = 'scoped memory for dis_embed_att_forward.1']
    %11 = vsyncpa [#allocation4], 0
    %s12 = scalar_lea.sflag [#allocation4], 1
    %13 = vsyncpa %s12, 0
    loop: start=0, step=1, limit=4
    $region2: #{dis_embed_att_forward.1} parent=1 // loop_pre_header
      _
    $region3: #{dis_embed_att_forward.1} parent=1 // loop_header
      %s15 = sphi 0, %s19
      %p16 = scmp.ge.s32.totalorder %s15, 4
      %s25 = sphi 0, %s27
      %s28 = sphi 0, %s25
      %s29 = sphi 0, %s28
      %s45 = sphi 0, %s29
      %s49 = sphi 0, %s49
      %s51 = sphi 0, %s49
      %s52 = sphi 0, %s51
      %s66 = sphi 0, %s52
      %s70 = sphi 0, %s70
      %s72 = sphi 0, %s70
      %s73 = sphi 0, %s72
      %s87 = sphi 0, %s73
      %s91 = sphi 0, %s91
      %s93 = sphi 0, %s91
      %s94 = sphi 0, %s93
      %s108 = sphi 0, %s94
      %s112 = sphi 0, %s112
      %s114 = sphi 0, %s112
      %s115 = sphi 0, %s114
      %s129 = sphi 0, %s115
      %s135 = sphi 0, %s137
      %s138 = sphi 0, %s135
      %s139 = sphi 0, %s138
      %s155 = sphi 0, %s139
    $region4: #{dis_embed_att_forward.1} parent=1 // loop_header_branch
      %18 = sbr.rel (%p16) target = $region8
    $region5: #{dis_embed_att_forward.1} parent=1 // loop_body
      %s20 = ssub.s32 %s15, 1
      %s21 = ssub.s32 %s15, 2
      %s22 = sadd.s32 %s15, 1
      %s23 = ssub.s32 %s15, %s22
      %p24 = scmp.eq.s32.totalorder %s23, 0
      %s26 = sadd.s32 %s25, 1
      %s27 = scalar_select %p24, %s25, %s26
      %p30 = pneg %p24
      %p31 = scmp.eq.s32.totalorder %s15, 1
      %p32 = por %p30, %p31
      %p33 = scmp.ne.s32.totalorder %s25, %s28
      %p34 = scmp.eq.s32.totalorder %s15, 0
      %p35 = por %p33, %p34
      %p36 = scmp.ne.s32.totalorder %s25, %s28
      %p37 = scmp.eq.s32.totalorder %s20, 1
      %p38 = por %p36, %p37
      %p39 = scmp.ne.s32.totalorder %s28, %s29
      %p40 = scmp.eq.s32.totalorder %s20, 0
      %p41 = por %p39, %p40
      %p42 = scmp.ne.s32.totalorder %s28, %s29
      %p43 = scmp.eq.s32.totalorder %s21, 1
      %p44 = por %p42, %p43
      %p46 = scmp.ne.s32.totalorder %s29, %s45
      %p47 = scmp.eq.s32.totalorder %s21, 0
      %p48 = por %p46, %p47
      %s50 = sadd.s32 %s49, 1
      %p53 = scmp.eq.s32.totalorder %s15, 1
      %p54 = scmp.ne.s32.totalorder %s49, %s51
      %p55 = scmp.eq.s32.totalorder %s15, 0
      %p56 = por %p54, %p55
      %p57 = scmp.ne.s32.totalorder %s49, %s51
      %p58 = scmp.eq.s32.totalorder %s20, 1
      %p59 = por %p57, %p58
      %p60 = scmp.ne.s32.totalorder %s51, %s52
      %p61 = scmp.eq.s32.totalorder %s20, 0
      %p62 = por %p60, %p61
      %p63 = scmp.ne.s32.totalorder %s51, %s52
      %p64 = scmp.eq.s32.totalorder %s21, 1
      %p65 = por %p63, %p64
      %p67 = scmp.ne.s32.totalorder %s52, %s66
      %p68 = scmp.eq.s32.totalorder %s21, 0
      %p69 = por %p67, %p68
      %s71 = sadd.s32 %s70, 1
      %p74 = scmp.eq.s32.totalorder %s15, 1
      %p75 = scmp.ne.s32.totalorder %s70, %s72
      %p76 = scmp.eq.s32.totalorder %s15, 0
      %p77 = por %p75, %p76
      %p78 = scmp.ne.s32.totalorder %s70, %s72
      %p79 = scmp.eq.s32.totalorder %s20, 1
      %p80 = por %p78, %p79
      %p81 = scmp.ne.s32.totalorder %s72, %s73
      %p82 = scmp.eq.s32.totalorder %s20, 0
      %p83 = por %p81, %p82
      %p84 = scmp.ne.s32.totalorder %s72, %s73
      %p85 = scmp.eq.s32.totalorder %s21, 1
      %p86 = por %p84, %p85
      %p88 = scmp.ne.s32.totalorder %s73, %s87
      %p89 = scmp.eq.s32.totalorder %s21, 0
      %p90 = por %p88, %p89
      %s92 = sadd.s32 %s91, 1
      %p95 = scmp.eq.s32.totalorder %s15, 1
      %p96 = scmp.ne.s32.totalorder %s91, %s93
      %p97 = scmp.eq.s32.totalorder %s15, 0
      %p98 = por %p96, %p97
      %p99 = scmp.ne.s32.totalorder %s91, %s93
      %p100 = scmp.eq.s32.totalorder %s20, 1
      %p101 = por %p99, %p100
      %p102 = scmp.ne.s32.totalorder %s93, %s94
      %p103 = scmp.eq.s32.totalorder %s20, 0
      %p104 = por %p102, %p103
      %p105 = scmp.ne.s32.totalorder %s93, %s94
      %p106 = scmp.eq.s32.totalorder %s21, 1
      %p107 = por %p105, %p106
      %p109 = scmp.ne.s32.totalorder %s94, %s108
      %p110 = scmp.eq.s32.totalorder %s21, 0
      %p111 = por %p109, %p110
      %s113 = sadd.s32 %s112, 1
      %p116 = scmp.eq.s32.totalorder %s15, 1
      %p117 = scmp.ne.s32.totalorder %s112, %s114
      %p118 = scmp.eq.s32.totalorder %s15, 0
      %p119 = por %p117, %p118
      %p120 = scmp.ne.s32.totalorder %s112, %s114
      %p121 = scmp.eq.s32.totalorder %s20, 1
      %p122 = por %p120, %p121
      %p123 = scmp.ne.s32.totalorder %s114, %s115
      %p124 = scmp.eq.s32.totalorder %s20, 0
      %p125 = por %p123, %p124
      %p126 = scmp.ne.s32.totalorder %s114, %s115
      %p127 = scmp.eq.s32.totalorder %s21, 1
      %p128 = por %p126, %p127
      %p130 = scmp.ne.s32.totalorder %s115, %s129
      %p131 = scmp.eq.s32.totalorder %s21, 0
      %p132 = por %p130, %p131
      %s133 = ssub.s32 %s15, %s22
      %p134 = scmp.eq.s32.totalorder %s133, 0
      %s136 = sadd.s32 %s135, 1
      %s137 = scalar_select %p134, %s135, %s136
      %p140 = pneg %p134
      %p141 = scmp.eq.s32.totalorder %s15, 1
      %p142 = por %p140, %p141
      %p143 = scmp.ne.s32.totalorder %s135, %s138
      %p144 = scmp.eq.s32.totalorder %s15, 0
      %p145 = por %p143, %p144
      %p146 = scmp.ne.s32.totalorder %s135, %s138
      %p147 = scmp.eq.s32.totalorder %s20, 1
      %p148 = por %p146, %p147
      %p149 = scmp.ne.s32.totalorder %s138, %s139
      %p150 = scmp.eq.s32.totalorder %s20, 0
      %p151 = por %p149, %p150
      %p152 = scmp.ne.s32.totalorder %s138, %s139
      %p153 = scmp.eq.s32.totalorder %s21, 1
      %p154 = por %p152, %p153
      %p156 = scmp.ne.s32.totalorder %s139, %s155
      %p157 = scmp.eq.s32.totalorder %s21, 0
      %p158 = por %p156, %p157
      %p159 = scmp.le.s32.totalorder 1, %s15
      %p160 = scmp.lt.s32.totalorder %s15, 3
      %p161 = pnand %p159, %p160
      %p162 = pneg %p161
      // Predicated region
      $region9: #{dis_embed_att_forward.1} parent=5 // pred_check
        _
      $region10: #{dis_embed_att_forward.1} parent=5 // pred_check_branch
        %164 = sbr.rel (%p161) target = $region12
      $region11: #{dis_embed_att_forward.1} parent=5 // pred_region
        %s165 = ssub.s32 %s15, 1
        // Predicated region
        $region13: #{dis_embed_att_forward.1} parent=11 // pred_check
          %p166 = pneg %p62
        $region14: #{dis_embed_att_forward.1} parent=11 // pred_check_branch
          %168 = sbr.rel (%p166) target = $region16
        $region15: #{dis_embed_att_forward.1} parent=11 // pred_region
          _
        $region16: #{dis_embed_att_forward.1} parent=11 // pred_fallthru
          _
        // Predicated region
        $region17: #{dis_embed_att_forward.1} parent=11 // pred_check
          %p169 = pneg %p83
        $region18: #{dis_embed_att_forward.1} parent=11 // pred_check_branch
          %171 = sbr.rel (%p169) target = $region20
        $region19: #{dis_embed_att_forward.1} parent=11 // pred_region
          _
        $region20: #{dis_embed_att_forward.1} parent=11 // pred_fallthru
          _
        // Predicated region
        $region21: #{dis_embed_att_forward.1} parent=11 // pred_check
          %p172 = pneg %p104
        $region22: #{dis_embed_att_forward.1} parent=11 // pred_check_branch
          %174 = sbr.rel (%p172) target = $region24
        $region23: #{dis_embed_att_forward.1} parent=11 // pred_region
          _
        $region24: #{dis_embed_att_forward.1} parent=11 // pred_fallthru
          _
        // Predicated region
        $region25: #{dis_embed_att_forward.1} parent=11 // pred_check
          %p175 = pneg %p125
        $region26: #{dis_embed_att_forward.1} parent=11 // pred_check_branch
          %177 = sbr.rel (%p175) target = $region28
        $region27: #{dis_embed_att_forward.1} parent=11 // pred_region
          _
        $region28: #{dis_embed_att_forward.1} parent=11 // pred_fallthru
          _
      $region12: #{dis_embed_att_forward.1} parent=5 // pred_fallthru
        _
      %p178 = scmp.lt.s32.totalorder %s15, 2
      // Predicated region
      $region29: #{dis_embed_att_forward.1} parent=5 // pred_check
        %p179 = pneg %p178
      $region30: #{dis_embed_att_forward.1} parent=5 // pred_check_branch
        %181 = sbr.rel (%p179) target = $region32
      $region31: #{dis_embed_att_forward.1} parent=5 // pred_region
        // Predicated region
        $region33: #{dis_embed_att_forward.1} parent=31 // pred_check
          %p182 = pneg %p35
        $region34: #{dis_embed_att_forward.1} parent=31 // pred_check_branch
          %184 = sbr.rel (%p182) target = $region36
        $region35: #{dis_embed_att_forward.1} parent=31 // pred_region
          %s185 = smul.u32 160, %s15
          %s186 = ssub.s32 313, %s185
          %p187 = scmp.lt.s32.totalorder %s186, 160
          %s188 = scalar_select %p187, %s186, 160
          %s189 = smul.u32 128, %s188
          %p190 = scmp.lt.s32.totalorder %s185, 312
          %s191 = scalar_select %p190, %s185, 312
          %s192 = smul.addr %s191, 8
          %s193 = scalar_lea.vmem %s0, %s192
          %s194 = smul.u32 160, %s15
          %s195 = ssub.s32 313, %s194
          %p196 = scmp.lt.s32.totalorder %s195, 160
          %s197 = scalar_select %p196, %s195, 160
          %s198 = smul.u32 128, %s197
        $region36: #{dis_embed_att_forward.1} parent=31 // pred_fallthru
          _
      $region32: #{dis_embed_att_forward.1} parent=5 // pred_fallthru
        _
      %p199 = scmp.le.s32.totalorder 1, %s15
      %p200 = scmp.lt.s32.totalorder %s15, 3
      %p201 = pnand %p199, %p200
      %p202 = pneg %p201
      // Predicated region
      $region37: #{dis_embed_att_forward.1} parent=5 // pred_check
        _
      $region38: #{dis_embed_att_forward.1} parent=5 // pred_check_branch
        %204 = sbr.rel (%p201) target = $region40
      $region39: #{dis_embed_att_forward.1} parent=5 // pred_region
        %s205 = ssub.s32 %s15, 1
        %s206 = smul.u32 160, %s20
        %s207 = ssub.s32 313, %s206
        %p208 = scmp.lt.s32.totalorder %s207, 160
        %s209 = scalar_select %p208, %s207, 160
        %s210 = smul.u32 128, %s209
        %p211 = scmp.lt.s32.totalorder %s206, 312
        %s212 = scalar_select %p211, %s206, 312
        %s213 = smul.addr %s212, 8
        %s214 = scalar_lea.vmem %s0, %s213
        %p215 = pneg %p41
        %p216 = pneg %p38
        %p217 = pneg %p62
        %p218 = pneg %p59
        %p219 = pneg %p83
        %p220 = pneg %p80
        %p221 = pneg %p104
        %p222 = pneg %p101
        %p223 = pneg %p125
        %p224 = pneg %p122
        %p225 = pneg %p151
        %p226 = pneg %p148
        %s227 = sand.u32 %s138, 1
        %s228 = scalar_lea.sflag [#allocation4], %s227
        %s229 = sand.u32 %s138, 1
        %s230 = smul.addr %s229, 10
        %s231 = scalar_lea.vmem [#allocation3], %s230
        %s232 = smul.u32 160, %s20
        %s233 = ssub.s32 313, %s232
        %p234 = scmp.lt.s32.totalorder %s233, 160
        %s235 = scalar_select %p234, %s233, 160
        %s236 = smul.u32 128, %s235
        %p237 = scmp.lt.s32.totalorder %s232, 312
        %s238 = scalar_select %p237, %s232, 312
        %s239 = smul.addr %s238, 8
        %s240 = scalar_lea.vmem %s0, %s239
        %s241 = smul.u32 160, %s20
        %s242 = ssub.s32 313, %s241
        %p243 = scmp.lt.s32.totalorder %s242, 160
        %s244 = scalar_select %p243, %s242, 160
        %s245 = smul.u32 128, %s244
        %s246 = smul.u32 10, %s20
        %v247 = vld [vmem:[%s1] sm:$0xff]
        %v248 = vld [vmem:[%s1 + $0x8] sm:$0xff]
        %v249 = vld [vmem:[%s1 + $0x10] sm:$0xff]
        %v250 = vld [vmem:[%s1 + $0x18] sm:$0xff]
        %v251 = vld [vmem:[%s1 + $0x20] sm:$0xff]
        %v252 = vld [vmem:[%s1 + $0x28] sm:$0xff]
        %v253 = vld [vmem:[%s1 + $0x30] sm:$0xff]
        %v254 = vld [vmem:[%s1 + $0x38] sm:$0xff]
        %v255 = vld [vmem:[%s1 + $0x40] sm:$0xff]
        %v256 = vld [vmem:[%s1 + $0x48] sm:$0xff]
        %v257 = vld [vmem:[%s1 + $0x50] sm:$0xff]
        %v258 = vld [vmem:[%s1 + $0x58] sm:$0xff]
        %v259 = vld [vmem:[%s1 + $0x60] sm:$0xff]
        %v260 = vld [vmem:[%s1 + $0x68] sm:$0xff]
        %v261 = vld [vmem:[%s1 + $0x70] sm:$0xff]
        %v262 = vld [vmem:[%s1 + $0x78] sm:$0xff]
        %v263 = vld [vmem:[%s240] sm:$0xff]
        %v264 = vld [vmem:[%s240 + $0x8] sm:$0xff]
        %v265 = vld [vmem:[%s240 + $0x10] sm:$0xff]
        %v266 = vld [vmem:[%s240 + $0x18] sm:$0xff]
        %v267 = vld [vmem:[%s240 + $0x20] sm:$0xff]
        %v268 = vld [vmem:[%s240 + $0x28] sm:$0xff]
        %v269 = vld [vmem:[%s240 + $0x30] sm:$0xff]
        %v270 = vld [vmem:[%s240 + $0x38] sm:$0xff]
        %v271 = vld [vmem:[%s240 + $0x40] sm:$0xff]
        %v272 = vld [vmem:[%s240 + $0x48] sm:$0xff]
        %v273 = vld [vmem:[%s240 + $0x50] sm:$0xff]
        %v274 = vld [vmem:[%s240 + $0x58] sm:$0xff]
        %v275 = vld [vmem:[%s240 + $0x60] sm:$0xff]
        %v276 = vld [vmem:[%s240 + $0x68] sm:$0xff]
        %v277 = vld [vmem:[%s240 + $0x70] sm:$0xff]
        %v278 = vld [vmem:[%s240 + $0x78] sm:$0xff]
        %v279 = vld [vmem:[%s240 + $0x80] sm:$0xff]
        %v280 = vld [vmem:[%s240 + $0x88] sm:$0xff]
        %v281 = vld [vmem:[%s240 + $0x90] sm:$0xff]
        %v282 = vld [vmem:[%s240 + $0x98] sm:$0xff]
        %v283 = vld [vmem:[%s240 + $0xa0] sm:$0xff]
        %v284 = vld [vmem:[%s240 + $0xa8] sm:$0xff]
        %v285 = vld [vmem:[%s240 + $0xb0] sm:$0xff]
        %v286 = vld [vmem:[%s240 + $0xb8] sm:$0xff]
        %v287 = vld [vmem:[%s240 + $0xc0] sm:$0xff]
        %v288 = vld [vmem:[%s240 + $0xc8] sm:$0xff]
        %v289 = vld [vmem:[%s240 + $0xd0] sm:$0xff]
        %v290 = vld [vmem:[%s240 + $0xd8] sm:$0xff]
        %v291 = vld [vmem:[%s240 + $0xe0] sm:$0xff]
        %v292 = vld [vmem:[%s240 + $0xe8] sm:$0xff]
        %v293 = vld [vmem:[%s240 + $0xf0] sm:$0xff]
        %v294 = vld [vmem:[%s240 + $0xf8] sm:$0xff]
        %v295 = vld [vmem:[%s240 + $0x100] sm:$0xff]
        %v296 = vld [vmem:[%s240 + $0x108] sm:$0xff]
        %v297 = vld [vmem:[%s240 + $0x110] sm:$0xff]
        %v298 = vld [vmem:[%s240 + $0x118] sm:$0xff]
        %v299 = vld [vmem:[%s240 + $0x120] sm:$0xff]
        %v300 = vld [vmem:[%s240 + $0x128] sm:$0xff]
        %v301 = vld [vmem:[%s240 + $0x130] sm:$0xff]
        %v302 = vld [vmem:[%s240 + $0x138] sm:$0xff]
        %v303 = vld [vmem:[%s240 + $0x140] sm:$0xff]
        %v304 = vld [vmem:[%s240 + $0x148] sm:$0xff]
        %v305 = vld [vmem:[%s240 + $0x150] sm:$0xff]
        %v306 = vld [vmem:[%s240 + $0x158] sm:$0xff]
        %v307 = vld [vmem:[%s240 + $0x160] sm:$0xff]
        %v308 = vld [vmem:[%s240 + $0x168] sm:$0xff]
        %v309 = vld [vmem:[%s240 + $0x170] sm:$0xff]
        %v310 = vld [vmem:[%s240 + $0x178] sm:$0xff]
        %v311 = vld [vmem:[%s240 + $0x180] sm:$0xff]
        %v312 = vld [vmem:[%s240 + $0x188] sm:$0xff]
        %v313 = vld [vmem:[%s240 + $0x190] sm:$0xff]
        %v314 = vld [vmem:[%s240 + $0x198] sm:$0xff]
        %v315 = vld [vmem:[%s240 + $0x1a0] sm:$0xff]
        %v316 = vld [vmem:[%s240 + $0x1a8] sm:$0xff]
        %v317 = vld [vmem:[%s240 + $0x1b0] sm:$0xff]
        %v318 = vld [vmem:[%s240 + $0x1b8] sm:$0xff]
        %v319 = vld [vmem:[%s240 + $0x1c0] sm:$0xff]
        %v320 = vld [vmem:[%s240 + $0x1c8] sm:$0xff]
        %v321 = vld [vmem:[%s240 + $0x1d0] sm:$0xff]
        %v322 = vld [vmem:[%s240 + $0x1d8] sm:$0xff]
        %v323 = vld [vmem:[%s240 + $0x1e0] sm:$0xff]
        %v324 = vld [vmem:[%s240 + $0x1e8] sm:$0xff]
        %v325 = vld [vmem:[%s240 + $0x1f0] sm:$0xff]
        %v326 = vld [vmem:[%s240 + $0x1f8] sm:$0xff]
        %v327 = vld [vmem:[%s240 + $0x200] sm:$0xff]
        %v328 = vld [vmem:[%s240 + $0x208] sm:$0xff]
        %v329 = vld [vmem:[%s240 + $0x210] sm:$0xff]
        %v330 = vld [vmem:[%s240 + $0x218] sm:$0xff]
        %v331 = vld [vmem:[%s240 + $0x220] sm:$0xff]
        %v332 = vld [vmem:[%s240 + $0x228] sm:$0xff]
        %v333 = vld [vmem:[%s240 + $0x230] sm:$0xff]
        %v334 = vld [vmem:[%s240 + $0x238] sm:$0xff]
        %v335 = vld [vmem:[%s240 + $0x240] sm:$0xff]
        %v336 = vld [vmem:[%s240 + $0x248] sm:$0xff]
        %v337 = vld [vmem:[%s240 + $0x250] sm:$0xff]
        %v338 = vld [vmem:[%s240 + $0x258] sm:$0xff]
        %v339 = vld [vmem:[%s240 + $0x260] sm:$0xff]
        %v340 = vld [vmem:[%s240 + $0x268] sm:$0xff]
        %v341 = vld [vmem:[%s240 + $0x270] sm:$0xff]
        %v342 = vld [vmem:[%s240 + $0x278] sm:$0xff]
        %v343 = vld [vmem:[%s240 + $0x280] sm:$0xff]
        %v344 = vld [vmem:[%s240 + $0x288] sm:$0xff]
        %v345 = vld [vmem:[%s240 + $0x290] sm:$0xff]
        %v346 = vld [vmem:[%s240 + $0x298] sm:$0xff]
        %v347 = vld [vmem:[%s240 + $0x2a0] sm:$0xff]
        %v348 = vld [vmem:[%s240 + $0x2a8] sm:$0xff]
        %v349 = vld [vmem:[%s240 + $0x2b0] sm:$0xff]
        %v350 = vld [vmem:[%s240 + $0x2b8] sm:$0xff]
        %v351 = vld [vmem:[%s240 + $0x2c0] sm:$0xff]
        %v352 = vld [vmem:[%s240 + $0x2c8] sm:$0xff]
        %v353 = vld [vmem:[%s240 + $0x2d0] sm:$0xff]
        %v354 = vld [vmem:[%s240 + $0x2d8] sm:$0xff]
        %v355 = vld [vmem:[%s240 + $0x2e0] sm:$0xff]
        %v356 = vld [vmem:[%s240 + $0x2e8] sm:$0xff]
        %v357 = vld [vmem:[%s240 + $0x2f0] sm:$0xff]
        %v358 = vld [vmem:[%s240 + $0x2f8] sm:$0xff]
        %v359 = vld [vmem:[%s240 + $0x300] sm:$0xff]
        %v360 = vld [vmem:[%s240 + $0x308] sm:$0xff]
        %v361 = vld [vmem:[%s240 + $0x310] sm:$0xff]
        %v362 = vld [vmem:[%s240 + $0x318] sm:$0xff]
        %v363 = vld [vmem:[%s240 + $0x320] sm:$0xff]
        %v364 = vld [vmem:[%s240 + $0x328] sm:$0xff]
        %v365 = vld [vmem:[%s240 + $0x330] sm:$0xff]
        %v366 = vld [vmem:[%s240 + $0x338] sm:$0xff]
        %v367 = vld [vmem:[%s240 + $0x340] sm:$0xff]
        %v368 = vld [vmem:[%s240 + $0x348] sm:$0xff]
        %v369 = vld [vmem:[%s240 + $0x350] sm:$0xff]
        %v370 = vld [vmem:[%s240 + $0x358] sm:$0xff]
        %v371 = vld [vmem:[%s240 + $0x360] sm:$0xff]
        %v372 = vld [vmem:[%s240 + $0x368] sm:$0xff]
        %v373 = vld [vmem:[%s240 + $0x370] sm:$0xff]
        %v374 = vld [vmem:[%s240 + $0x378] sm:$0xff]
        %v375 = vld [vmem:[%s240 + $0x380] sm:$0xff]
        %v376 = vld [vmem:[%s240 + $0x388] sm:$0xff]
        %v377 = vld [vmem:[%s240 + $0x390] sm:$0xff]
        %v378 = vld [vmem:[%s240 + $0x398] sm:$0xff]
        %v379 = vld [vmem:[%s240 + $0x3a0] sm:$0xff]
        %v380 = vld [vmem:[%s240 + $0x3a8] sm:$0xff]
        %v381 = vld [vmem:[%s240 + $0x3b0] sm:$0xff]
        %v382 = vld [vmem:[%s240 + $0x3b8] sm:$0xff]
        %v383 = vld [vmem:[%s240 + $0x3c0] sm:$0xff]
        %v384 = vld [vmem:[%s240 + $0x3c8] sm:$0xff]
        %v385 = vld [vmem:[%s240 + $0x3d0] sm:$0xff]
        %v386 = vld [vmem:[%s240 + $0x3d8] sm:$0xff]
        %v387 = vld [vmem:[%s240 + $0x3e0] sm:$0xff]
        %v388 = vld [vmem:[%s240 + $0x3e8] sm:$0xff]
        %v389 = vld [vmem:[%s240 + $0x3f0] sm:$0xff]
        %v390 = vld [vmem:[%s240 + $0x3f8] sm:$0xff]
        %v391 = vld [vmem:[%s240 + $0x400] sm:$0xff]
        %v392 = vld [vmem:[%s240 + $0x408] sm:$0xff]
        %v393 = vld [vmem:[%s240 + $0x410] sm:$0xff]
        %v394 = vld [vmem:[%s240 + $0x418] sm:$0xff]
        %v395 = vld [vmem:[%s240 + $0x420] sm:$0xff]
        %v396 = vld [vmem:[%s240 + $0x428] sm:$0xff]
        %v397 = vld [vmem:[%s240 + $0x430] sm:$0xff]
        %v398 = vld [vmem:[%s240 + $0x438] sm:$0xff]
        %v399 = vld [vmem:[%s240 + $0x440] sm:$0xff]
        %v400 = vld [vmem:[%s240 + $0x448] sm:$0xff]
        %v401 = vld [vmem:[%s240 + $0x450] sm:$0xff]
        %v402 = vld [vmem:[%s240 + $0x458] sm:$0xff]
        %v403 = vld [vmem:[%s240 + $0x460] sm:$0xff]
        %v404 = vld [vmem:[%s240 + $0x468] sm:$0xff]
        %v405 = vld [vmem:[%s240 + $0x470] sm:$0xff]
        %v406 = vld [vmem:[%s240 + $0x478] sm:$0xff]
        %v407 = vld [vmem:[%s240 + $0x480] sm:$0xff]
        %v408 = vld [vmem:[%s240 + $0x488] sm:$0xff]
        %v409 = vld [vmem:[%s240 + $0x490] sm:$0xff]
        %v410 = vld [vmem:[%s240 + $0x498] sm:$0xff]
        %v411 = vld [vmem:[%s240 + $0x4a0] sm:$0xff]
        %v412 = vld [vmem:[%s240 + $0x4a8] sm:$0xff]
        %v413 = vld [vmem:[%s240 + $0x4b0] sm:$0xff]
        %v414 = vld [vmem:[%s240 + $0x4b8] sm:$0xff]
        %v415 = vld [vmem:[%s240 + $0x4c0] sm:$0xff]
        %v416 = vld [vmem:[%s240 + $0x4c8] sm:$0xff]
        %v417 = vld [vmem:[%s240 + $0x4d0] sm:$0xff]
        %v418 = vld [vmem:[%s240 + $0x4d8] sm:$0xff]
        %v419 = vld [vmem:[%s240 + $0x4e0] sm:$0xff]
        %v420 = vld [vmem:[%s240 + $0x4e8] sm:$0xff]
        %v421 = vld [vmem:[%s240 + $0x4f0] sm:$0xff]
        %v422 = vld [vmem:[%s240 + $0x4f8] sm:$0xff]
        %v423 = vld [vmem:[%s2] sm:$0xff]
        %v424 = vld [vmem:[%s2 + $0x8] sm:$0xff]
        %v425 = vld [vmem:[%s2 + $0x10] sm:$0xff]
        %v426 = vld [vmem:[%s2 + $0x18] sm:$0xff]
        %v427 = vld [vmem:[%s2 + $0x20] sm:$0xff]
        %v428 = vld [vmem:[%s2 + $0x28] sm:$0xff]
        %v429 = vld [vmem:[%s2 + $0x30] sm:$0xff]
        %v430 = vld [vmem:[%s2 + $0x38] sm:$0xff]
        %v431 = vld [vmem:[%s2 + $0x40] sm:$0xff]
        %v432 = vld [vmem:[%s2 + $0x48] sm:$0xff]
        %v433 = vld [vmem:[%s2 + $0x50] sm:$0xff]
        %v434 = vld [vmem:[%s2 + $0x58] sm:$0xff]
        %v435 = vld [vmem:[%s2 + $0x60] sm:$0xff]
        %v436 = vld [vmem:[%s2 + $0x68] sm:$0xff]
        %v437 = vld [vmem:[%s2 + $0x70] sm:$0xff]
        %v438 = vld [vmem:[%s2 + $0x78] sm:$0xff]
        %440 = vset.pattern.permute.xlu0 0
        %441 = vperm.xlu0 %440, %v423
        %v442 = vpop.permute.xlu0 %441
        %445 = vset.pattern.permute.xlu0 0
        %446 = vperm.xlu0 %445, %v424
        %v447 = vpop.permute.xlu0 %446
        %450 = vset.pattern.permute.xlu0 0
        %451 = vperm.xlu0 %450, %v425
        %v452 = vpop.permute.xlu0 %451
        %455 = vset.pattern.permute.xlu0 0
        %456 = vperm.xlu0 %455, %v426
        %v457 = vpop.permute.xlu0 %456
        %460 = vset.pattern.permute.xlu0 0
        %461 = vperm.xlu0 %460, %v427
        %v462 = vpop.permute.xlu0 %461
        %465 = vset.pattern.permute.xlu0 0
        %466 = vperm.xlu0 %465, %v428
        %v467 = vpop.permute.xlu0 %466
        %470 = vset.pattern.permute.xlu0 0
        %471 = vperm.xlu0 %470, %v429
        %v472 = vpop.permute.xlu0 %471
        %475 = vset.pattern.permute.xlu0 0
        %476 = vperm.xlu0 %475, %v430
        %v477 = vpop.permute.xlu0 %476
        %480 = vset.pattern.permute.xlu0 0
        %481 = vperm.xlu0 %480, %v431
        %v482 = vpop.permute.xlu0 %481
        %485 = vset.pattern.permute.xlu0 0
        %486 = vperm.xlu0 %485, %v432
        %v487 = vpop.permute.xlu0 %486
        %490 = vset.pattern.permute.xlu0 0
        %491 = vperm.xlu0 %490, %v433
        %v492 = vpop.permute.xlu0 %491
        %495 = vset.pattern.permute.xlu0 0
        %496 = vperm.xlu0 %495, %v434
        %v497 = vpop.permute.xlu0 %496
        %500 = vset.pattern.permute.xlu0 0
        %501 = vperm.xlu0 %500, %v435
        %v502 = vpop.permute.xlu0 %501
        %505 = vset.pattern.permute.xlu0 0
        %506 = vperm.xlu0 %505, %v436
        %v507 = vpop.permute.xlu0 %506
        %510 = vset.pattern.permute.xlu0 0
        %511 = vperm.xlu0 %510, %v437
        %v512 = vpop.permute.xlu0 %511
        %515 = vset.pattern.permute.xlu0 0
        %516 = vperm.xlu0 %515, %v438
        %v517 = vpop.permute.xlu0 %516
        %vm519 = vcmask 523264
        %v521 = vsel %vm519, %v247, 0
        %v524 = vsel %vm519, %v248, 0
        %v527 = vsel %vm519, %v249, 0
        %v530 = vsel %vm519, %v250, 0
        %v533 = vsel %vm519, %v251, 0
        %v536 = vsel %vm519, %v252, 0
        %v539 = vsel %vm519, %v253, 0
        %v542 = vsel %vm519, %v254, 0
        %v545 = vsel %vm519, %v255, 0
        %v548 = vsel %vm519, %v256, 0
        %v551 = vsel %vm519, %v257, 0
        %v554 = vsel %vm519, %v258, 0
        %v557 = vsel %vm519, %v259, 0
        %v560 = vsel %vm519, %v260, 0
        %v563 = vsel %vm519, %v261, 0
        %v566 = vsel %vm519, %v262, 0
        %v569 = vsel %vm519, %v263, 0
        %v572 = vsel %vm519, %v264, 0
        %v575 = vsel %vm519, %v265, 0
        %v578 = vsel %vm519, %v266, 0
        %v581 = vsel %vm519, %v267, 0
        %v584 = vsel %vm519, %v268, 0
        %v587 = vsel %vm519, %v269, 0
        %v590 = vsel %vm519, %v270, 0
        %v593 = vsel %vm519, %v271, 0
        %v596 = vsel %vm519, %v272, 0
        %v599 = vsel %vm519, %v273, 0
        %v602 = vsel %vm519, %v274, 0
        %v605 = vsel %vm519, %v275, 0
        %v608 = vsel %vm519, %v276, 0
        %v611 = vsel %vm519, %v277, 0
        %v614 = vsel %vm519, %v278, 0
        %v617 = vsel %vm519, %v279, 0
        %v620 = vsel %vm519, %v280, 0
        %v623 = vsel %vm519, %v281, 0
        %v626 = vsel %vm519, %v282, 0
        %v629 = vsel %vm519, %v283, 0
        %v632 = vsel %vm519, %v284, 0
        %v635 = vsel %vm519, %v285, 0
        %v638 = vsel %vm519, %v286, 0
        %v641 = vsel %vm519, %v287, 0
        %v644 = vsel %vm519, %v288, 0
        %v647 = vsel %vm519, %v289, 0
        %v650 = vsel %vm519, %v290, 0
        %v653 = vsel %vm519, %v291, 0
        %v656 = vsel %vm519, %v292, 0
        %v659 = vsel %vm519, %v293, 0
        %v662 = vsel %vm519, %v294, 0
        %v665 = vsel %vm519, %v295, 0
        %v668 = vsel %vm519, %v296, 0
        %v671 = vsel %vm519, %v297, 0
        %v674 = vsel %vm519, %v298, 0
        %v677 = vsel %vm519, %v299, 0
        %v680 = vsel %vm519, %v300, 0
        %v683 = vsel %vm519, %v301, 0
        %v686 = vsel %vm519, %v302, 0
        %v689 = vsel %vm519, %v303, 0
        %v692 = vsel %vm519, %v304, 0
        %v695 = vsel %vm519, %v305, 0
        %v698 = vsel %vm519, %v306, 0
        %v701 = vsel %vm519, %v307, 0
        %v704 = vsel %vm519, %v308, 0
        %v707 = vsel %vm519, %v309, 0
        %v710 = vsel %vm519, %v310, 0
        %v713 = vsel %vm519, %v311, 0
        %v716 = vsel %vm519, %v312, 0
        %v719 = vsel %vm519, %v313, 0
        %v722 = vsel %vm519, %v314, 0
        %v725 = vsel %vm519, %v315, 0
        %v728 = vsel %vm519, %v316, 0
        %v731 = vsel %vm519, %v317, 0
        %v734 = vsel %vm519, %v318, 0
        %v737 = vsel %vm519, %v319, 0
        %v740 = vsel %vm519, %v320, 0
        %v743 = vsel %vm519, %v321, 0
        %v746 = vsel %vm519, %v322, 0
        %v749 = vsel %vm519, %v323, 0
        %v752 = vsel %vm519, %v324, 0
        %v755 = vsel %vm519, %v325, 0
        %v758 = vsel %vm519, %v326, 0
        %v761 = vsel %vm519, %v327, 0
        %v764 = vsel %vm519, %v328, 0
        %v767 = vsel %vm519, %v329, 0
        %v770 = vsel %vm519, %v330, 0
        %v773 = vsel %vm519, %v331, 0
        %v776 = vsel %vm519, %v332, 0
        %v779 = vsel %vm519, %v333, 0
        %v782 = vsel %vm519, %v334, 0
        %v785 = vsel %vm519, %v335, 0
        %v788 = vsel %vm519, %v336, 0
        %v791 = vsel %vm519, %v337, 0
        %v794 = vsel %vm519, %v338, 0
        %v797 = vsel %vm519, %v339, 0
        %v800 = vsel %vm519, %v340, 0
        %v803 = vsel %vm519, %v341, 0
        %v806 = vsel %vm519, %v342, 0
        %v809 = vsel %vm519, %v343, 0
        %v812 = vsel %vm519, %v344, 0
        %v815 = vsel %vm519, %v345, 0
        %v818 = vsel %vm519, %v346, 0
        %v821 = vsel %vm519, %v347, 0
        %v824 = vsel %vm519, %v348, 0
        %v827 = vsel %vm519, %v349, 0
        %v830 = vsel %vm519, %v350, 0
        %v833 = vsel %vm519, %v351, 0
        %v836 = vsel %vm519, %v352, 0
        %v839 = vsel %vm519, %v353, 0
        %v842 = vsel %vm519, %v354, 0
        %v845 = vsel %vm519, %v355, 0
        %v848 = vsel %vm519, %v356, 0
        %v851 = vsel %vm519, %v357, 0
        %v854 = vsel %vm519, %v358, 0
        %v857 = vsel %vm519, %v359, 0
        %v860 = vsel %vm519, %v360, 0
        %v863 = vsel %vm519, %v361, 0
        %v866 = vsel %vm519, %v362, 0
        %v869 = vsel %vm519, %v363, 0
        %v872 = vsel %vm519, %v364, 0
        %v875 = vsel %vm519, %v365, 0
        %v878 = vsel %vm519, %v366, 0
        %v881 = vsel %vm519, %v367, 0
        %v884 = vsel %vm519, %v368, 0
        %v887 = vsel %vm519, %v369, 0
        %v890 = vsel %vm519, %v370, 0
        %v893 = vsel %vm519, %v371, 0
        %v896 = vsel %vm519, %v372, 0
        %v899 = vsel %vm519, %v373, 0
        %v902 = vsel %vm519, %v374, 0
        %v905 = vsel %vm519, %v375, 0
        %v908 = vsel %vm519, %v376, 0
        %v911 = vsel %vm519, %v377, 0
        %v914 = vsel %vm519, %v378, 0
        %v917 = vsel %vm519, %v379, 0
        %v920 = vsel %vm519, %v380, 0
        %v923 = vsel %vm519, %v381, 0
        %v926 = vsel %vm519, %v382, 0
        %v929 = vsel %vm519, %v383, 0
        %v932 = vsel %vm519, %v384, 0
        %v935 = vsel %vm519, %v385, 0
        %v938 = vsel %vm519, %v386, 0
        %v941 = vsel %vm519, %v387, 0
        %v944 = vsel %vm519, %v388, 0
        %v947 = vsel %vm519, %v389, 0
        %v950 = vsel %vm519, %v390, 0
        %v953 = vsel %vm519, %v391, 0
        %v956 = vsel %vm519, %v392, 0
        %v959 = vsel %vm519, %v393, 0
        %v962 = vsel %vm519, %v394, 0
        %v965 = vsel %vm519, %v395, 0
        %v968 = vsel %vm519, %v396, 0
        %v971 = vsel %vm519, %v397, 0
        %v974 = vsel %vm519, %v398, 0
        %v977 = vsel %vm519, %v399, 0
        %v980 = vsel %vm519, %v400, 0
        %v983 = vsel %vm519, %v401, 0
        %v986 = vsel %vm519, %v402, 0
        %v989 = vsel %vm519, %v403, 0
        %v992 = vsel %vm519, %v404, 0
        %v995 = vsel %vm519, %v405, 0
        %v998 = vsel %vm519, %v406, 0
        %v1001 = vsel %vm519, %v407, 0
        %v1004 = vsel %vm519, %v408, 0
        %v1007 = vsel %vm519, %v409, 0
        %v1010 = vsel %vm519, %v410, 0
        %v1013 = vsel %vm519, %v411, 0
        %v1016 = vsel %vm519, %v412, 0
        %v1019 = vsel %vm519, %v413, 0
        %v1022 = vsel %vm519, %v414, 0
        %v1025 = vsel %vm519, %v415, 0
        %v1028 = vsel %vm519, %v416, 0
        %v1031 = vsel %vm519, %v417, 0
        %v1034 = vsel %vm519, %v418, 0
        %v1037 = vsel %vm519, %v419, 0
        %v1040 = vsel %vm519, %v420, 0
        %v1043 = vsel %vm519, %v421, 0
        %v1046 = vsel %vm519, %v422, 0
        %1048 = vmatprep.subr.mxu0 0.0
        %1049 = vmatpush1.xpose.msra.mxu0 %v569
        %1050 = vmatprep.subr.mxu0 0.0
        %1051 = vmatpush1.xpose.msra.mxu0 %v572
        %1052 = vmatprep.subr.mxu0 0.0
        %1053 = vmatpush1.xpose.msra.mxu0 %v575
        %1054 = vmatprep.subr.mxu0 0.0
        %1055 = vmatpush1.xpose.msra.mxu0 %v578
        %1056 = vmatprep.subr.mxu0 0.0
        %1057 = vmatpush1.xpose.msra.mxu0 %v581
        %1058 = vmatprep.subr.mxu0 0.0
        %1059 = vmatpush1.xpose.msra.mxu0 %v584
        %1060 = vmatprep.subr.mxu0 0.0
        %1061 = vmatpush1.xpose.msra.mxu0 %v587
        %1062 = vmatprep.subr.mxu0 0.0
        %1063 = vmatpush1.xpose.msra.mxu0 %v590
        %1064 = vmatprep.subr.mxu0 0.0
        %1065 = vmatpush1.xpose.msra.mxu0 %v593
        %1066 = vmatprep.subr.mxu0 0.0
        %1067 = vmatpush1.xpose.msra.mxu0 %v596
        %1068 = vmatprep.subr.mxu0 0.0
        %1069 = vmatpush1.xpose.msra.mxu0 %v599
        %1070 = vmatprep.subr.mxu0 0.0
        %1071 = vmatpush1.xpose.msra.mxu0 %v602
        %1072 = vmatprep.subr.mxu0 0.0
        %1073 = vmatpush1.xpose.msra.mxu0 %v605
        %1074 = vmatprep.subr.mxu0 0.0
        %1075 = vmatpush1.xpose.msra.mxu0 %v608
        %1076 = vmatprep.subr.mxu0 0.0
        %1077 = vmatpush1.xpose.msra.mxu0 %v611
        %1078 = vmatprep.subr.mxu0 0.0
        %1079 = vmatpush1.xpose.msra.mxu0 %v614
        %1080 = vmatprep.subr.mxu0 0.0
        %1081 = vmatpush1.xpose.msra.mxu0 %v617
        %1082 = vmatprep.subr.mxu0 0.0
        %1083 = vmatpush1.xpose.msra.mxu0 %v620
        %1084 = vmatprep.subr.mxu0 0.0
        %1085 = vmatpush1.xpose.msra.mxu0 %v623
        %1086 = vmatprep.subr.mxu0 0.0
        %1087 = vmatpush1.xpose.msra.mxu0 %v626
        %1088 = vmatprep.subr.mxu0 0.0
        %1089 = vmatpush1.xpose.msra.mxu0 %v629
        %1090 = vmatprep.subr.mxu0 0.0
        %1091 = vmatpush1.xpose.msra.mxu0 %v632
        %1092 = vmatprep.subr.mxu0 0.0
        %1093 = vmatpush1.xpose.msra.mxu0 %v635
        %1094 = vmatprep.subr.mxu0 0.0
        %1095 = vmatpush1.xpose.msra.mxu0 %v638
        %1096 = vmatprep.subr.mxu0 0.0
        %1097 = vmatpush1.xpose.msra.mxu0 %v641
        %1098 = vmatprep.subr.mxu0 0.0
        %1099 = vmatpush1.xpose.msra.mxu0 %v644
        %1100 = vmatprep.subr.mxu0 0.0
        %1101 = vmatpush1.xpose.msra.mxu0 %v647
        %1102 = vmatprep.subr.mxu0 0.0
        %1103 = vmatpush1.xpose.msra.mxu0 %v650
        %1104 = vmatprep.subr.mxu0 0.0
        %1105 = vmatpush1.xpose.msra.mxu0 %v653
        %1106 = vmatprep.subr.mxu0 0.0
        %1107 = vmatpush1.xpose.msra.mxu0 %v656
        %1108 = vmatprep.subr.mxu0 0.0
        %1109 = vmatpush1.xpose.msra.mxu0 %v659
        %1110 = vmatprep.subr.mxu0 0.0
        %1111 = vmatpush1.xpose.msra.mxu0 %v662
        %1112 = vmatprep.mubr.f32.mxu0 0.0
        %1113 = vmatmul.mubr.f32.gmra.mrb[0].mxu0 %v521
        %v1114 = vpop.f32.mrb[0].mxu0
        %v1115 = vadd.f32 %v442, %v1114
        %v1116 = vpop.f32.mrb[0].mxu0
        %v1117 = vadd.f32 %v442, %v1116
        %1118 = vmatprep.mubr.f32.mxu0 0.0
        %1119 = vmatmul.mubr.f32.gmra.mrb[0].mxu0 %v524
        %v1120 = vpop.f32.mrb[0].mxu0
        %v1121 = vadd.f32 %v447, %v1120
        %v1122 = vpop.f32.mrb[0].mxu0
        %v1123 = vadd.f32 %v447, %v1122
        %1124 = vmatprep.mubr.f32.mxu0 0.0
        %1125 = vmatmul.mubr.f32.gmra.mrb[0].mxu0 %v527
        %v1126 = vpop.f32.mrb[0].mxu0
        %v1127 = vadd.f32 %v452, %v1126
        %v1128 = vpop.f32.mrb[0].mxu0
        %v1129 = vadd.f32 %v452, %v1128
        %1130 = vmatprep.mubr.f32.mxu0 0.0
        %1131 = vmatmul.mubr.f32.gmra.mrb[0].mxu0 %v530
        %v1132 = vpop.f32.mrb[0].mxu0
        %v1133 = vadd.f32 %v457, %v1132
        %v1134 = vpop.f32.mrb[0].mxu0
        %v1135 = vadd.f32 %v457, %v1134
        %1136 = vmatprep.mubr.f32.mxu0 0.0
        %1137 = vmatmul.mubr.f32.gmra.mrb[0].mxu0 %v533
        %v1138 = vpop.f32.mrb[0].mxu0
        %v1139 = vadd.f32 %v462, %v1138
        %v1140 = vpop.f32.mrb[0].mxu0
        %v1141 = vadd.f32 %v462, %v1140
        %1142 = vmatprep.mubr.f32.mxu0 0.0
        %1143 = vmatmul.mubr.f32.gmra.mrb[0].mxu0 %v536
        %v1144 = vpop.f32.mrb[0].mxu0
        %v1145 = vadd.f32 %v467, %v1144
        %v1146 = vpop.f32.mrb[0].mxu0
        %v1147 = vadd.f32 %v467, %v1146
        %1148 = vmatprep.mubr.f32.mxu0 0.0
        %1149 = vmatmul.mubr.f32.gmra.mrb[0].mxu0 %v539
        %v1150 = vpop.f32.mrb[0].mxu0
        %v1151 = vadd.f32 %v472, %v1150
        %v1152 = vpop.f32.mrb[0].mxu0
        %v1153 = vadd.f32 %v472, %v1152
        %1154 = vmatprep.mubr.f32.mxu0 0.0
        %1155 = vmatmul.mubr.f32.gmra.mrb[0].mxu0 %v542
        %v1156 = vpop.f32.mrb[0].mxu0
        %v1157 = vadd.f32 %v477, %v1156
        %v1158 = vpop.f32.mrb[0].mxu0
        %v1159 = vadd.f32 %v477, %v1158
        %1160 = vmatprep.mubr.f32.mxu0 0.0
        %1161 = vmatmul.mubr.f32.gmra.mrb[0].mxu0 %v545
        %v1162 = vpop.f32.mrb[0].mxu0
        %v1163 = vadd.f32 %v482, %v1162
        %v1164 = vpop.f32.mrb[0].mxu0
        %v1165 = vadd.f32 %v482, %v1164
        %1166 = vmatprep.mubr.f32.mxu0 0.0
        %1167 = vmatmul.mubr.f32.gmra.mrb[0].mxu0 %v548
        %v1168 = vpop.f32.mrb[0].mxu0
        %v1169 = vadd.f32 %v487, %v1168
        %v1170 = vpop.f32.mrb[0].mxu0
        %v1171 = vadd.f32 %v487, %v1170
        %1172 = vmatprep.mubr.f32.mxu0 0.0
        %1173 = vmatmul.mubr.f32.gmra.mrb[0].mxu0 %v551
        %v1174 = vpop.f32.mrb[0].mxu0
        %v1175 = vadd.f32 %v492, %v1174
        %v1176 = vpop.f32.mrb[0].mxu0
        %v1177 = vadd.f32 %v492, %v1176
        %1178 = vmatprep.mubr.f32.mxu0 0.0
        %1179 = vmatmul.mubr.f32.gmra.mrb[0].mxu0 %v554
        %v1180 = vpop.f32.mrb[0].mxu0
        %v1181 = vadd.f32 %v497, %v1180
        %v1182 = vpop.f32.mrb[0].mxu0
        %v1183 = vadd.f32 %v497, %v1182
        %1184 = vmatprep.mubr.f32.mxu0 0.0
        %1185 = vmatmul.mubr.f32.gmra.mrb[0].mxu0 %v557
        %v1186 = vpop.f32.mrb[0].mxu0
        %v1187 = vadd.f32 %v502, %v1186
        %v1188 = vpop.f32.mrb[0].mxu0
        %v1189 = vadd.f32 %v502, %v1188
        %1190 = vmatprep.mubr.f32.mxu0 0.0
        %1191 = vmatmul.mubr.f32.gmra.mrb[0].mxu0 %v560
        %v1192 = vpop.f32.mrb[0].mxu0
        %v1193 = vadd.f32 %v507, %v1192
        %v1194 = vpop.f32.mrb[0].mxu0
        %v1195 = vadd.f32 %v507, %v1194
        %1196 = vmatprep.mubr.f32.mxu0 0.0
        %1197 = vmatmul.mubr.f32.gmra.mrb[0].mxu0 %v563
        %v1198 = vpop.f32.mrb[0].mxu0
        %v1199 = vadd.f32 %v512, %v1198
        %v1200 = vpop.f32.mrb[0].mxu0
        %v1201 = vadd.f32 %v512, %v1200
        %1202 = vmatprep.mubr.f32.mxu0 0.0
        %1203 = vmatmul.mubr.f32.gmra.mrb[0].mxu0 %v566
        %v1204 = vpop.f32.mrb[0].mxu0
        %v1205 = vadd.f32 %v517, %v1204
        %v1206 = vpop.f32.mrb[0].mxu0
        %v1207 = vadd.f32 %v517, %v1206
        %1208 = vdwg.mxu0
        %1209 = vmatprep.subr.mxu0 0.0
        %1210 = vmatpush1.xpose.msra.mxu0 %v665
        %1211 = vmatprep.subr.mxu0 0.0
        %1212 = vmatpush1.xpose.msra.mxu0 %v668
        %1213 = vmatprep.subr.mxu0 0.0
        %1214 = vmatpush1.xpose.msra.mxu0 %v671
        %1215 = vmatprep.subr.mxu0 0.0
        %1216 = vmatpush1.xpose.msra.mxu0 %v674
        %1217 = vmatprep.subr.mxu0 0.0
        %1218 = vmatpush1.xpose.msra.mxu0 %v677
        %1219 = vmatprep.subr.mxu0 0.0
        %1220 = vmatpush1.xpose.msra.mxu0 %v680
        %1221 = vmatprep.subr.mxu0 0.0
        %1222 = vmatpush1.xpose.msra.mxu0 %v683
        %1223 = vmatprep.subr.mxu0 0.0
        %1224 = vmatpush1.xpose.msra.mxu0 %v686
        %1225 = vmatprep.subr.mxu0 0.0
        %1226 = vmatpush1.xpose.msra.mxu0 %v689
        %1227 = vmatprep.subr.mxu0 0.0
        %1228 = vmatpush1.xpose.msra.mxu0 %v692
        %1229 = vmatprep.subr.mxu0 0.0
        %1230 = vmatpush1.xpose.msra.mxu0 %v695
        %1231 = vmatprep.subr.mxu0 0.0
        %1232 = vmatpush1.xpose.msra.mxu0 %v698
        %1233 = vmatprep.subr.mxu0 0.0
        %1234 = vmatpush1.xpose.msra.mxu0 %v701
        %1235 = vmatprep.subr.mxu0 0.0
        %1236 = vmatpush1.xpose.msra.mxu0 %v704
        %1237 = vmatprep.subr.mxu0 0.0
        %1238 = vmatpush1.xpose.msra.mxu0 %v707
        %1239 = vmatprep.subr.mxu0 0.0
        %1240 = vmatpush1.xpose.msra.mxu0 %v710
        %1241 = vmatprep.subr.mxu0 0.0
        %1242 = vmatpush1.xpose.msra.mxu0 %v713
        %1243 = vmatprep.subr.mxu0 0.0
        %1244 = vmatpush1.xpose.msra.mxu0 %v716
        %1245 = vmatprep.subr.mxu0 0.0
        %1246 = vmatpush1.xpose.msra.mxu0 %v719
        %1247 = vmatprep.subr.mxu0 0.0
        %1248 = vmatpush1.xpose.msra.mxu0 %v722
        %1249 = vmatprep.subr.mxu0 0.0
        %1250 = vmatpush1.xpose.msra.mxu0 %v725
        %1251 = vmatprep.subr.mxu0 0.0
        %1252 = vmatpush1.xpose.msra.mxu0 %v728
        %1253 = vmatprep.subr.mxu0 0.0
        %1254 = vmatpush1.xpose.msra.mxu0 %v731
        %1255 = vmatprep.subr.mxu0 0.0
        %1256 = vmatpush1.xpose.msra.mxu0 %v734
        %1257 = vmatprep.subr.mxu0 0.0
        %1258 = vmatpush1.xpose.msra.mxu0 %v737
        %1259 = vmatprep.subr.mxu0 0.0
        %1260 = vmatpush1.xpose.msra.mxu0 %v740
        %1261 = vmatprep.subr.mxu0 0.0
        %1262 = vmatpush1.xpose.msra.mxu0 %v743
        %1263 = vmatprep.subr.mxu0 0.0
        %1264 = vmatpush1.xpose.msra.mxu0 %v746
        %1265 = vmatprep.subr.mxu0 0.0
        %1266 = vmatpush1.xpose.msra.mxu0 %v749
        %1267 = vmatprep.subr.mxu0 0.0
        %1268 = vmatpush1.xpose.msra.mxu0 %v752
        %1269 = vmatprep.subr.mxu0 0.0
        %1270 = vmatpush1.xpose.msra.mxu0 %v755
        %1271 = vmatprep.subr.mxu0 0.0
        %1272 = vmatpush1.xpose.msra.mxu0 %v758
        %1273 = vmatprep.mubr.f32.mxu0 0.0
        %1274 = vmatmul.mubr.f32.gmra.mrb[0].mxu0 %v521
        %v1275 = vpop.f32.mrb[0].mxu0
        %v1276 = vadd.f32 %v442, %v1275
        %v1277 = vpop.f32.mrb[0].mxu0
        %v1278 = vadd.f32 %v442, %v1277
        %1279 = vmatprep.mubr.f32.mxu0 0.0
        %1280 = vmatmul.mubr.f32.gmra.mrb[0].mxu0 %v524
        %v1281 = vpop.f32.mrb[0].mxu0
        %v1282 = vadd.f32 %v447, %v1281
        %v1283 = vpop.f32.mrb[0].mxu0
        %v1284 = vadd.f32 %v447, %v1283
        %1285 = vmatprep.mubr.f32.mxu0 0.0
        %1286 = vmatmul.mubr.f32.gmra.mrb[0].mxu0 %v527
        %v1287 = vpop.f32.mrb[0].mxu0
        %v1288 = vadd.f32 %v452, %v1287
        %v1289 = vpop.f32.mrb[0].mxu0
        %v1290 = vadd.f32 %v452, %v1289
        %1291 = vmatprep.mubr.f32.mxu0 0.0
        %1292 = vmatmul.mubr.f32.gmra.mrb[0].mxu0 %v530
        %v1293 = vpop.f32.mrb[0].mxu0
        %v1294 = vadd.f32 %v457, %v1293
        %v1295 = vpop.f32.mrb[0].mxu0
        %v1296 = vadd.f32 %v457, %v1295
        %1297 = vmatprep.mubr.f32.mxu0 0.0
        %1298 = vmatmul.mubr.f32.gmra.mrb[0].mxu0 %v533
        %v1299 = vpop.f32.mrb[0].mxu0
        %v1300 = vadd.f32 %v462, %v1299
        %v1301 = vpop.f32.mrb[0].mxu0
        %v1302 = vadd.f32 %v462, %v1301
        %1303 = vmatprep.mubr.f32.mxu0 0.0
        %1304 = vmatmul.mubr.f32.gmra.mrb[0].mxu0 %v536
        %v1305 = vpop.f32.mrb[0].mxu0
        %v1306 = vadd.f32 %v467, %v1305
        %v1307 = vpop.f32.mrb[0].mxu0
        %v1308 = vadd.f32 %v467, %v1307
        %1309 = vmatprep.mubr.f32.mxu0 0.0
        %1310 = vmatmul.mubr.f32.gmra.mrb[0].mxu0 %v539
        %v1311 = vpop.f32.mrb[0].mxu0
        %v1312 = vadd.f32 %v472, %v1311
        %v1313 = vpop.f32.mrb[0].mxu0
        %v1314 = vadd.f32 %v472, %v1313
        %1315 = vmatprep.mubr.f32.mxu0 0.0
        %1316 = vmatmul.mubr.f32.gmra.mrb[0].mxu0 %v542
        %v1317 = vpop.f32.mrb[0].mxu0
        %v1318 = vadd.f32 %v477, %v1317
        %v1319 = vpop.f32.mrb[0].mxu0
        %v1320 = vadd.f32 %v477, %v1319
        %1321 = vmatprep.mubr.f32.mxu0 0.0
        %1322 = vmatmul.mubr.f32.gmra.mrb[0].mxu0 %v545
        %v1323 = vpop.f32.mrb[0].mxu0
        %v1324 = vadd.f32 %v482, %v1323
        %v1325 = vpop.f32.mrb[0].mxu0
        %v1326 = vadd.f32 %v482, %v1325
        %1327 = vmatprep.mubr.f32.mxu0 0.0
        %1328 = vmatmul.mubr.f32.gmra.mrb[0].mxu0 %v548
        %v1329 = vpop.f32.mrb[0].mxu0
        %v1330 = vadd.f32 %v487, %v1329
        %v1331 = vpop.f32.mrb[0].mxu0
        %v1332 = vadd.f32 %v487, %v1331
        %1333 = vmatprep.mubr.f32.mxu0 0.0
        %1334 = vmatmul.mubr.f32.gmra.mrb[0].mxu0 %v551
        %v1335 = vpop.f32.mrb[0].mxu0
        %v1336 = vadd.f32 %v492, %v1335
        %v1337 = vpop.f32.mrb[0].mxu0
        %v1338 = vadd.f32 %v492, %v1337
        %1339 = vmatprep.mubr.f32.mxu0 0.0
        %1340 = vmatmul.mubr.f32.gmra.mrb[0].mxu0 %v554
        %v1341 = vpop.f32.mrb[0].mxu0
        %v1342 = vadd.f32 %v497, %v1341
        %v1343 = vpop.f32.mrb[0].mxu0
        %v1344 = vadd.f32 %v497, %v1343
        %1345 = vmatprep.mubr.f32.mxu0 0.0
        %1346 = vmatmul.mubr.f32.gmra.mrb[0].mxu0 %v557
        %v1347 = vpop.f32.mrb[0].mxu0
        %v1348 = vadd.f32 %v502, %v1347
        %v1349 = vpop.f32.mrb[0].mxu0
        %v1350 = vadd.f32 %v502, %v1349
        %1351 = vmatprep.mubr.f32.mxu0 0.0
        %1352 = vmatmul.mubr.f32.gmra.mrb[0].mxu0 %v560
        %v1353 = vpop.f32.mrb[0].mxu0
        %v1354 = vadd.f32 %v507, %v1353
        %v1355 = vpop.f32.mrb[0].mxu0
        %v1356 = vadd.f32 %v507, %v1355
        %1357 = vmatprep.mubr.f32.mxu0 0.0
        %1358 = vmatmul.mubr.f32.gmra.mrb[0].mxu0 %v563
        %v1359 = vpop.f32.mrb[0].mxu0
        %v1360 = vadd.f32 %v512, %v1359
        %v1361 = vpop.f32.mrb[0].mxu0
        %v1362 = vadd.f32 %v512, %v1361
        %1363 = vmatprep.mubr.f32.mxu0 0.0
        %1364 = vmatmul.mubr.f32.gmra.mrb[0].mxu0 %v566
        %v1365 = vpop.f32.mrb[0].mxu0
        %v1366 = vadd.f32 %v517, %v1365
        %v1367 = vpop.f32.mrb[0].mxu0
        %v1368 = vadd.f32 %v517, %v1367
        %1369 = vdwg.mxu0
        %1370 = vmatprep.subr.mxu0 0.0
        %1371 = vmatpush1.xpose.msra.mxu0 %v761
        %1372 = vmatprep.subr.mxu0 0.0
        %1373 = vmatpush1.xpose.msra.mxu0 %v764
        %1374 = vmatprep.subr.mxu0 0.0
        %1375 = vmatpush1.xpose.msra.mxu0 %v767
        %1376 = vmatprep.subr.mxu0 0.0
        %1377 = vmatpush1.xpose.msra.mxu0 %v770
        %1378 = vmatprep.subr.mxu0 0.0
        %1379 = vmatpush1.xpose.msra.mxu0 %v773
        %1380 = vmatprep.subr.mxu0 0.0
        %1381 = vmatpush1.xpose.msra.mxu0 %v776
        %1382 = vmatprep.subr.mxu0 0.0
        %1383 = vmatpush1.xpose.msra.mxu0 %v779
        %1384 = vmatprep.subr.mxu0 0.0
        %1385 = vmatpush1.xpose.msra.mxu0 %v782
        %1386 = vmatprep.subr.mxu0 0.0
        %1387 = vmatpush1.xpose.msra.mxu0 %v785
        %1388 = vmatprep.subr.mxu0 0.0
        %1389 = vmatpush1.xpose.msra.mxu0 %v788
        %1390 = vmatprep.subr.mxu0 0.0
        %1391 = vmatpush1.xpose.msra.mxu0 %v791
        %1392 = vmatprep.subr.mxu0 0.0
        %1393 = vmatpush1.xpose.msra.mxu0 %v794
        %1394 = vmatprep.subr.mxu0 0.0
        %1395 = vmatpush1.xpose.msra.mxu0 %v797
        %1396 = vmatprep.subr.mxu0 0.0
        %1397 = vmatpush1.xpose.msra.mxu0 %v800
        %1398 = vmatprep.subr.mxu0 0.0
        %1399 = vmatpush1.xpose.msra.mxu0 %v803
        %1400 = vmatprep.subr.mxu0 0.0
        %1401 = vmatpush1.xpose.msra.mxu0 %v806
        %1402 = vmatprep.subr.mxu0 0.0
        %1403 = vmatpush1.xpose.msra.mxu0 %v809
        %1404 = vmatprep.subr.mxu0 0.0
        %1405 = vmatpush1.xpose.msra.mxu0 %v812
        %1406 = vmatprep.subr.mxu0 0.0
        %1407 = vmatpush1.xpose.msra.mxu0 %v815
        %1408 = vmatprep.subr.mxu0 0.0
        %1409 = vmatpush1.xpose.msra.mxu0 %v818
        %1410 = vmatprep.subr.mxu0 0.0
        %1411 = vmatpush1.xpose.msra.mxu0 %v821
        %1412 = vmatprep.subr.mxu0 0.0
        %1413 = vmatpush1.xpose.msra.mxu0 %v824
        %1414 = vmatprep.subr.mxu0 0.0
        %1415 = vmatpush1.xpose.msra.mxu0 %v827
        %1416 = vmatprep.subr.mxu0 0.0
        %1417 = vmatpush1.xpose.msra.mxu0 %v830
        %1418 = vmatprep.subr.mxu0 0.0
        %1419 = vmatpush1.xpose.msra.mxu0 %v833
        %1420 = vmatprep.subr.mxu0 0.0
        %1421 = vmatpush1.xpose.msra.mxu0 %v836
        %1422 = vmatprep.subr.mxu0 0.0
        %1423 = vmatpush1.xpose.msra.mxu0 %v839
        %1424 = vmatprep.subr.mxu0 0.0
        %1425 = vmatpush1.xpose.msra.mxu0 %v842
        %1426 = vmatprep.subr.mxu0 0.0
        %1427 = vmatpush1.xpose.msra.mxu0 %v845
        %1428 = vmatprep.subr.mxu0 0.0
        %1429 = vmatpush1.xpose.msra.mxu0 %v848
        %1430 = vmatprep.subr.mxu0 0.0
        %1431 = vmatpush1.xpose.msra.mxu0 %v851
        %1432 = vmatprep.subr.mxu0 0.0
        %1433 = vmatpush1.xpose.msra.mxu0 %v854
        %1434 = vmatprep.mubr.f32.mxu0 0.0
        %1435 = vmatmul.mubr.f32.gmra.mrb[0].mxu0 %v521
        %v1436 = vpop.f32.mrb[0].mxu0
        %v1437 = vadd.f32 %v442, %v1436
        %v1438 = vpop.f32.mrb[0].mxu0
        %v1439 = vadd.f32 %v442, %v1438
        %1440 = vmatprep.mubr.f32.mxu0 0.0
        %1441 = vmatmul.mubr.f32.gmra.mrb[0].mxu0 %v524
        %v1442 = vpop.f32.mrb[0].mxu0
        %v1443 = vadd.f32 %v447, %v1442
        %v1444 = vpop.f32.mrb[0].mxu0
        %v1445 = vadd.f32 %v447, %v1444
        %1446 = vmatprep.mubr.f32.mxu0 0.0
        %1447 = vmatmul.mubr.f32.gmra.mrb[0].mxu0 %v527
        %v1448 = vpop.f32.mrb[0].mxu0
        %v1449 = vadd.f32 %v452, %v1448
        %v1450 = vpop.f32.mrb[0].mxu0
        %v1451 = vadd.f32 %v452, %v1450
        %1452 = vmatprep.mubr.f32.mxu0 0.0
        %1453 = vmatmul.mubr.f32.gmra.mrb[0].mxu0 %v530
        %v1454 = vpop.f32.mrb[0].mxu0
        %v1455 = vadd.f32 %v457, %v1454
        %v1456 = vpop.f32.mrb[0].mxu0
        %v1457 = vadd.f32 %v457, %v1456
        %1458 = vmatprep.mubr.f32.mxu0 0.0
        %1459 = vmatmul.mubr.f32.gmra.mrb[0].mxu0 %v533
        %v1460 = vpop.f32.mrb[0].mxu0
        %v1461 = vadd.f32 %v462, %v1460
        %v1462 = vpop.f32.mrb[0].mxu0
        %v1463 = vadd.f32 %v462, %v1462
        %1464 = vmatprep.mubr.f32.mxu0 0.0
        %1465 = vmatmul.mubr.f32.gmra.mrb[0].mxu0 %v536
        %v1466 = vpop.f32.mrb[0].mxu0
        %v1467 = vadd.f32 %v467, %v1466
        %v1468 = vpop.f32.mrb[0].mxu0
        %v1469 = vadd.f32 %v467, %v1468
        %1470 = vmatprep.mubr.f32.mxu0 0.0
        %1471 = vmatmul.mubr.f32.gmra.mrb[0].mxu0 %v539
        %v1472 = vpop.f32.mrb[0].mxu0
        %v1473 = vadd.f32 %v472, %v1472
        %v1474 = vpop.f32.mrb[0].mxu0
        %v1475 = vadd.f32 %v472, %v1474
        %1476 = vmatprep.mubr.f32.mxu0 0.0
        %1477 = vmatmul.mubr.f32.gmra.mrb[0].mxu0 %v542
        %v1478 = vpop.f32.mrb[0].mxu0
        %v1479 = vadd.f32 %v477, %v1478
        %v1480 = vpop.f32.mrb[0].mxu0
        %v1481 = vadd.f32 %v477, %v1480
        %1482 = vmatprep.mubr.f32.mxu0 0.0
        %1483 = vmatmul.mubr.f32.gmra.mrb[0].mxu0 %v545
        %v1484 = vpop.f32.mrb[0].mxu0
        %v1485 = vadd.f32 %v482, %v1484
        %v1486 = vpop.f32.mrb[0].mxu0
        %v1487 = vadd.f32 %v482, %v1486
        %1488 = vmatprep.mubr.f32.mxu0 0.0
        %1489 = vmatmul.mubr.f32.gmra.mrb[0].mxu0 %v548
        %v1490 = vpop.f32.mrb[0].mxu0
        %v1491 = vadd.f32 %v487, %v1490
        %v1492 = vpop.f32.mrb[0].mxu0
        %v1493 = vadd.f32 %v487, %v1492
        %1494 = vmatprep.mubr.f32.mxu0 0.0
        %1495 = vmatmul.mubr.f32.gmra.mrb[0].mxu0 %v551
        %v1496 = vpop.f32.mrb[0].mxu0
        %v1497 = vadd.f32 %v492, %v1496
        %v1498 = vpop.f32.mrb[0].mxu0
        %v1499 = vadd.f32 %v492, %v1498
        %1500 = vmatprep.mubr.f32.mxu0 0.0
        %1501 = vmatmul.mubr.f32.gmra.mrb[0].mxu0 %v554
        %v1502 = vpop.f32.mrb[0].mxu0
        %v1503 = vadd.f32 %v497, %v1502
        %v1504 = vpop.f32.mrb[0].mxu0
        %v1505 = vadd.f32 %v497, %v1504
        %1506 = vmatprep.mubr.f32.mxu0 0.0
        %1507 = vmatmul.mubr.f32.gmra.mrb[0].mxu0 %v557
        %v1508 = vpop.f32.mrb[0].mxu0
        %v1509 = vadd.f32 %v502, %v1508
        %v1510 = vpop.f32.mrb[0].mxu0
        %v1511 = vadd.f32 %v502, %v1510
        %1512 = vmatprep.mubr.f32.mxu0 0.0
        %1513 = vmatmul.mubr.f32.gmra.mrb[0].mxu0 %v560
        %v1514 = vpop.f32.mrb[0].mxu0
        %v1515 = vadd.f32 %v507, %v1514
        %v1516 = vpop.f32.mrb[0].mxu0
        %v1517 = vadd.f32 %v507, %v1516
        %1518 = vmatprep.mubr.f32.mxu0 0.0
        %1519 = vmatmul.mubr.f32.gmra.mrb[0].mxu0 %v563
        %v1520 = vpop.f32.mrb[0].mxu0
        %v1521 = vadd.f32 %v512, %v1520
        %v1522 = vpop.f32.mrb[0].mxu0
        %v1523 = vadd.f32 %v512, %v1522
        %1524 = vmatprep.mubr.f32.mxu0 0.0
        %1525 = vmatmul.mubr.f32.gmra.mrb[0].mxu0 %v566
        %v1526 = vpop.f32.mrb[0].mxu0
        %v1527 = vadd.f32 %v517, %v1526
        %v1528 = vpop.f32.mrb[0].mxu0
        %v1529 = vadd.f32 %v517, %v1528
        %1530 = vdwg.mxu0
        %1531 = vmatprep.subr.mxu0 0.0
        %1532 = vmatpush1.xpose.msra.mxu0 %v857
        %1533 = vmatprep.subr.mxu0 0.0
        %1534 = vmatpush1.xpose.msra.mxu0 %v860
        %1535 = vmatprep.subr.mxu0 0.0
        %1536 = vmatpush1.xpose.msra.mxu0 %v863
        %1537 = vmatprep.subr.mxu0 0.0
        %1538 = vmatpush1.xpose.msra.mxu0 %v866
        %1539 = vmatprep.subr.mxu0 0.0
        %1540 = vmatpush1.xpose.msra.mxu0 %v869
        %1541 = vmatprep.subr.mxu0 0.0
        %1542 = vmatpush1.xpose.msra.mxu0 %v872
        %1543 = vmatprep.subr.mxu0 0.0
        %1544 = vmatpush1.xpose.msra.mxu0 %v875
        %1545 = vmatprep.subr.mxu0 0.0
        %1546 = vmatpush1.xpose.msra.mxu0 %v878
        %1547 = vmatprep.subr.mxu0 0.0
        %1548 = vmatpush1.xpose.msra.mxu0 %v881
        %1549 = vmatprep.subr.mxu0 0.0
        %1550 = vmatpush1.xpose.msra.mxu0 %v884
        %1551 = vmatprep.subr.mxu0 0.0
        %1552 = vmatpush1.xpose.msra.mxu0 %v887
        %1553 = vmatprep.subr.mxu0 0.0
        %1554 = vmatpush1.xpose.msra.mxu0 %v890
        %1555 = vmatprep.subr.mxu0 0.0
        %1556 = vmatpush1.xpose.msra.mxu0 %v893
        %1557 = vmatprep.subr.mxu0 0.0
        %1558 = vmatpush1.xpose.msra.mxu0 %v896
        %1559 = vmatprep.subr.mxu0 0.0
        %1560 = vmatpush1.xpose.msra.mxu0 %v899
        %1561 = vmatprep.subr.mxu0 0.0
        %1562 = vmatpush1.xpose.msra.mxu0 %v902
        %1563 = vmatprep.subr.mxu0 0.0
        %1564 = vmatpush1.xpose.msra.mxu0 %v905
        %1565 = vmatprep.subr.mxu0 0.0
        %1566 = vmatpush1.xpose.msra.mxu0 %v908
        %1567 = vmatprep.subr.mxu0 0.0
        %1568 = vmatpush1.xpose.msra.mxu0 %v911
        %1569 = vmatprep.subr.mxu0 0.0
        %1570 = vmatpush1.xpose.msra.mxu0 %v914
        %1571 = vmatprep.subr.mxu0 0.0
        %1572 = vmatpush1.xpose.msra.mxu0 %v917
        %1573 = vmatprep.subr.mxu0 0.0
        %1574 = vmatpush1.xpose.msra.mxu0 %v920
        %1575 = vmatprep.subr.mxu0 0.0
        %1576 = vmatpush1.xpose.msra.mxu0 %v923
        %1577 = vmatprep.subr.mxu0 0.0
        %1578 = vmatpush1.xpose.msra.mxu0 %v926
        %1579 = vmatprep.subr.mxu0 0.0
        %1580 = vmatpush1.xpose.msra.mxu0 %v929
        %1581 = vmatprep.subr.mxu0 0.0
        %1582 = vmatpush1.xpose.msra.mxu0 %v932
        %1583 = vmatprep.subr.mxu0 0.0
        %1584 = vmatpush1.xpose.msra.mxu0 %v935
        %1585 = vmatprep.subr.mxu0 0.0
        %1586 = vmatpush1.xpose.msra.mxu0 %v938
        %1587 = vmatprep.subr.mxu0 0.0
        %1588 = vmatpush1.xpose.msra.mxu0 %v941
        %1589 = vmatprep.subr.mxu0 0.0
        %1590 = vmatpush1.xpose.msra.mxu0 %v944
        %1591 = vmatprep.subr.mxu0 0.0
        %1592 = vmatpush1.xpose.msra.mxu0 %v947
        %1593 = vmatprep.subr.mxu0 0.0
        %1594 = vmatpush1.xpose.msra.mxu0 %v950
        %1595 = vmatprep.mubr.f32.mxu0 0.0
        %1596 = vmatmul.mubr.f32.gmra.mrb[0].mxu0 %v521
        %v1597 = vpop.f32.mrb[0].mxu0
        %v1598 = vadd.f32 %v442, %v1597
        %v1599 = vpop.f32.mrb[0].mxu0
        %v1600 = vadd.f32 %v442, %v1599
        %1601 = vmatprep.mubr.f32.mxu0 0.0
        %1602 = vmatmul.mubr.f32.gmra.mrb[0].mxu0 %v524
        %v1603 = vpop.f32.mrb[0].mxu0
        %v1604 = vadd.f32 %v447, %v1603
        %v1605 = vpop.f32.mrb[0].mxu0
        %v1606 = vadd.f32 %v447, %v1605
        %1607 = vmatprep.mubr.f32.mxu0 0.0
        %1608 = vmatmul.mubr.f32.gmra.mrb[0].mxu0 %v527
        %v1609 = vpop.f32.mrb[0].mxu0
        %v1610 = vadd.f32 %v452, %v1609
        %v1611 = vpop.f32.mrb[0].mxu0
        %v1612 = vadd.f32 %v452, %v1611
        %1613 = vmatprep.mubr.f32.mxu0 0.0
        %1614 = vmatmul.mubr.f32.gmra.mrb[0].mxu0 %v530
        %v1615 = vpop.f32.mrb[0].mxu0
        %v1616 = vadd.f32 %v457, %v1615
        %v1617 = vpop.f32.mrb[0].mxu0
        %v1618 = vadd.f32 %v457, %v1617
        %1619 = vmatprep.mubr.f32.mxu0 0.0
        %1620 = vmatmul.mubr.f32.gmra.mrb[0].mxu0 %v533
        %v1621 = vpop.f32.mrb[0].mxu0
        %v1622 = vadd.f32 %v462, %v1621
        %v1623 = vpop.f32.mrb[0].mxu0
        %v1624 = vadd.f32 %v462, %v1623
        %1625 = vmatprep.mubr.f32.mxu0 0.0
        %1626 = vmatmul.mubr.f32.gmra.mrb[0].mxu0 %v536
        %v1627 = vpop.f32.mrb[0].mxu0
        %v1628 = vadd.f32 %v467, %v1627
        %v1629 = vpop.f32.mrb[0].mxu0
        %v1630 = vadd.f32 %v467, %v1629
        %1631 = vmatprep.mubr.f32.mxu0 0.0
        %1632 = vmatmul.mubr.f32.gmra.mrb[0].mxu0 %v539
        %v1633 = vpop.f32.mrb[0].mxu0
        %v1634 = vadd.f32 %v472, %v1633
        %v1635 = vpop.f32.mrb[0].mxu0
        %v1636 = vadd.f32 %v472, %v1635
        %1637 = vmatprep.mubr.f32.mxu0 0.0
        %1638 = vmatmul.mubr.f32.gmra.mrb[0].mxu0 %v542
        %v1639 = vpop.f32.mrb[0].mxu0
        %v1640 = vadd.f32 %v477, %v1639
        %v1641 = vpop.f32.mrb[0].mxu0
        %v1642 = vadd.f32 %v477, %v1641
        %1643 = vmatprep.mubr.f32.mxu0 0.0
        %1644 = vmatmul.mubr.f32.gmra.mrb[0].mxu0 %v545
        %v1645 = vpop.f32.mrb[0].mxu0
        %v1646 = vadd.f32 %v482, %v1645
        %v1647 = vpop.f32.mrb[0].mxu0
        %v1648 = vadd.f32 %v482, %v1647
        %1649 = vmatprep.mubr.f32.mxu0 0.0
        %1650 = vmatmul.mubr.f32.gmra.mrb[0].mxu0 %v548
        %v1651 = vpop.f32.mrb[0].mxu0
        %v1652 = vadd.f32 %v487, %v1651
        %v1653 = vpop.f32.mrb[0].mxu0
        %v1654 = vadd.f32 %v487, %v1653
        %1655 = vmatprep.mubr.f32.mxu0 0.0
        %1656 = vmatmul.mubr.f32.gmra.mrb[0].mxu0 %v551
        %v1657 = vpop.f32.mrb[0].mxu0
        %v1658 = vadd.f32 %v492, %v1657
        %v1659 = vpop.f32.mrb[0].mxu0
        %v1660 = vadd.f32 %v492, %v1659
        %1661 = vmatprep.mubr.f32.mxu0 0.0
        %1662 = vmatmul.mubr.f32.gmra.mrb[0].mxu0 %v554
        %v1663 = vpop.f32.mrb[0].mxu0
        %v1664 = vadd.f32 %v497, %v1663
        %v1665 = vpop.f32.mrb[0].mxu0
        %v1666 = vadd.f32 %v497, %v1665
        %1667 = vmatprep.mubr.f32.mxu0 0.0
        %1668 = vmatmul.mubr.f32.gmra.mrb[0].mxu0 %v557
        %v1669 = vpop.f32.mrb[0].mxu0
        %v1670 = vadd.f32 %v502, %v1669
        %v1671 = vpop.f32.mrb[0].mxu0
        %v1672 = vadd.f32 %v502, %v1671
        %1673 = vmatprep.mubr.f32.mxu0 0.0
        %1674 = vmatmul.mubr.f32.gmra.mrb[0].mxu0 %v560
        %v1675 = vpop.f32.mrb[0].mxu0
        %v1676 = vadd.f32 %v507, %v1675
        %v1677 = vpop.f32.mrb[0].mxu0
        %v1678 = vadd.f32 %v507, %v1677
        %1679 = vmatprep.mubr.f32.mxu0 0.0
        %1680 = vmatmul.mubr.f32.gmra.mrb[0].mxu0 %v563
        %v1681 = vpop.f32.mrb[0].mxu0
        %v1682 = vadd.f32 %v512, %v1681
        %v1683 = vpop.f32.mrb[0].mxu0
        %v1684 = vadd.f32 %v512, %v1683
        %1685 = vmatprep.mubr.f32.mxu0 0.0
        %1686 = vmatmul.mubr.f32.gmra.mrb[0].mxu0 %v566
        %v1687 = vpop.f32.mrb[0].mxu0
        %v1688 = vadd.f32 %v517, %v1687
        %v1689 = vpop.f32.mrb[0].mxu0
        %v1690 = vadd.f32 %v517, %v1689
        %1691 = vdwg.mxu0
        %1692 = vmatprep.subr.mxu0 0.0
        %1693 = vmatpush1.xpose.msra.mxu0 %v953
        %1694 = vmatprep.subr.mxu0 0.0
        %1695 = vmatpush1.xpose.msra.mxu0 %v956
        %1696 = vmatprep.subr.mxu0 0.0
        %1697 = vmatpush1.xpose.msra.mxu0 %v959
        %1698 = vmatprep.subr.mxu0 0.0
        %1699 = vmatpush1.xpose.msra.mxu0 %v962
        %1700 = vmatprep.subr.mxu0 0.0
        %1701 = vmatpush1.xpose.msra.mxu0 %v965
        %1702 = vmatprep.subr.mxu0 0.0
        %1703 = vmatpush1.xpose.msra.mxu0 %v968
        %1704 = vmatprep.subr.mxu0 0.0
        %1705 = vmatpush1.xpose.msra.mxu0 %v971
        %1706 = vmatprep.subr.mxu0 0.0
        %1707 = vmatpush1.xpose.msra.mxu0 %v974
        %1708 = vmatprep.subr.mxu0 0.0
        %1709 = vmatpush1.xpose.msra.mxu0 %v977
        %1710 = vmatprep.subr.mxu0 0.0
        %1711 = vmatpush1.xpose.msra.mxu0 %v980
        %1712 = vmatprep.subr.mxu0 0.0
        %1713 = vmatpush1.xpose.msra.mxu0 %v983
        %1714 = vmatprep.subr.mxu0 0.0
        %1715 = vmatpush1.xpose.msra.mxu0 %v986
        %1716 = vmatprep.subr.mxu0 0.0
        %1717 = vmatpush1.xpose.msra.mxu0 %v989
        %1718 = vmatprep.subr.mxu0 0.0
        %1719 = vmatpush1.xpose.msra.mxu0 %v992
        %1720 = vmatprep.subr.mxu0 0.0
        %1721 = vmatpush1.xpose.msra.mxu0 %v995
        %1722 = vmatprep.subr.mxu0 0.0
        %1723 = vmatpush1.xpose.msra.mxu0 %v998
        %1724 = vmatprep.subr.mxu0 0.0
        %1725 = vmatpush1.xpose.msra.mxu0 %v1001
        %1726 = vmatprep.subr.mxu0 0.0
        %1727 = vmatpush1.xpose.msra.mxu0 %v1004
        %1728 = vmatprep.subr.mxu0 0.0
        %1729 = vmatpush1.xpose.msra.mxu0 %v1007
        %1730 = vmatprep.subr.mxu0 0.0
        %1731 = vmatpush1.xpose.msra.mxu0 %v1010
        %1732 = vmatprep.subr.mxu0 0.0
        %1733 = vmatpush1.xpose.msra.mxu0 %v1013
        %1734 = vmatprep.subr.mxu0 0.0
        %1735 = vmatpush1.xpose.msra.mxu0 %v1016
        %1736 = vmatprep.subr.mxu0 0.0
        %1737 = vmatpush1.xpose.msra.mxu0 %v1019
        %1738 = vmatprep.subr.mxu0 0.0
        %1739 = vmatpush1.xpose.msra.mxu0 %v1022
        %1740 = vmatprep.subr.mxu0 0.0
        %1741 = vmatpush1.xpose.msra.mxu0 %v1025
        %1742 = vmatprep.subr.mxu0 0.0
        %1743 = vmatpush1.xpose.msra.mxu0 %v1028
        %1744 = vmatprep.subr.mxu0 0.0
        %1745 = vmatpush1.xpose.msra.mxu0 %v1031
        %1746 = vmatprep.subr.mxu0 0.0
        %1747 = vmatpush1.xpose.msra.mxu0 %v1034
        %1748 = vmatprep.subr.mxu0 0.0
        %1749 = vmatpush1.xpose.msra.mxu0 %v1037
        %1750 = vmatprep.subr.mxu0 0.0
        %1751 = vmatpush1.xpose.msra.mxu0 %v1040
        %1752 = vmatprep.subr.mxu0 0.0
        %1753 = vmatpush1.xpose.msra.mxu0 %v1043
        %1754 = vmatprep.subr.mxu0 0.0
        %1755 = vmatpush1.xpose.msra.mxu0 %v1046
        %1756 = vmatprep.mubr.f32.mxu0 0.0
        %1757 = vmatmul.mubr.f32.gmra.mrb[0].mxu0 %v521
        %v1758 = vpop.f32.mrb[0].mxu0
        %v1759 = vadd.f32 %v442, %v1758
        %v1760 = vpop.f32.mrb[0].mxu0
        %v1761 = vadd.f32 %v442, %v1760
        %1762 = vmatprep.mubr.f32.mxu0 0.0
        %1763 = vmatmul.mubr.f32.gmra.mrb[0].mxu0 %v524
        %v1764 = vpop.f32.mrb[0].mxu0
        %v1765 = vadd.f32 %v447, %v1764
        %v1766 = vpop.f32.mrb[0].mxu0
        %v1767 = vadd.f32 %v447, %v1766
        %1768 = vmatprep.mubr.f32.mxu0 0.0
        %1769 = vmatmul.mubr.f32.gmra.mrb[0].mxu0 %v527
        %v1770 = vpop.f32.mrb[0].mxu0
        %v1771 = vadd.f32 %v452, %v1770
        %v1772 = vpop.f32.mrb[0].mxu0
        %v1773 = vadd.f32 %v452, %v1772
        %1774 = vmatprep.mubr.f32.mxu0 0.0
        %1775 = vmatmul.mubr.f32.gmra.mrb[0].mxu0 %v530
        %v1776 = vpop.f32.mrb[0].mxu0
        %v1777 = vadd.f32 %v457, %v1776
        %v1778 = vpop.f32.mrb[0].mxu0
        %v1779 = vadd.f32 %v457, %v1778
        %1780 = vmatprep.mubr.f32.mxu0 0.0
        %1781 = vmatmul.mubr.f32.gmra.mrb[0].mxu0 %v533
        %v1782 = vpop.f32.mrb[0].mxu0
        %v1783 = vadd.f32 %v462, %v1782
        %v1784 = vpop.f32.mrb[0].mxu0
        %v1785 = vadd.f32 %v462, %v1784
        %1786 = vmatprep.mubr.f32.mxu0 0.0
        %1787 = vmatmul.mubr.f32.gmra.mrb[0].mxu0 %v536
        %v1788 = vpop.f32.mrb[0].mxu0
        %v1789 = vadd.f32 %v467, %v1788
        %v1790 = vpop.f32.mrb[0].mxu0
        %v1791 = vadd.f32 %v467, %v1790
        %1792 = vmatprep.mubr.f32.mxu0 0.0
        %1793 = vmatmul.mubr.f32.gmra.mrb[0].mxu0 %v539
        %v1794 = vpop.f32.mrb[0].mxu0
        %v1795 = vadd.f32 %v472, %v1794
        %v1796 = vpop.f32.mrb[0].mxu0
        %v1797 = vadd.f32 %v472, %v1796
        %1798 = vmatprep.mubr.f32.mxu0 0.0
        %1799 = vmatmul.mubr.f32.gmra.mrb[0].mxu0 %v542
        %v1800 = vpop.f32.mrb[0].mxu0
        %v1801 = vadd.f32 %v477, %v1800
        %v1802 = vpop.f32.mrb[0].mxu0
        %v1803 = vadd.f32 %v477, %v1802
        %1804 = vmatprep.mubr.f32.mxu0 0.0
        %1805 = vmatmul.mubr.f32.gmra.mrb[0].mxu0 %v545
        %v1806 = vpop.f32.mrb[0].mxu0
        %v1807 = vadd.f32 %v482, %v1806
        %v1808 = vpop.f32.mrb[0].mxu0
        %v1809 = vadd.f32 %v482, %v1808
        %1810 = vmatprep.mubr.f32.mxu0 0.0
        %1811 = vmatmul.mubr.f32.gmra.mrb[0].mxu0 %v548
        %v1812 = vpop.f32.mrb[0].mxu0
        %v1813 = vadd.f32 %v487, %v1812
        %v1814 = vpop.f32.mrb[0].mxu0
        %v1815 = vadd.f32 %v487, %v1814
        %1816 = vmatprep.mubr.f32.mxu0 0.0
        %1817 = vmatmul.mubr.f32.gmra.mrb[0].mxu0 %v551
        %v1818 = vpop.f32.mrb[0].mxu0
        %v1819 = vadd.f32 %v492, %v1818
        %v1820 = vpop.f32.mrb[0].mxu0
        %v1821 = vadd.f32 %v492, %v1820
        %1822 = vmatprep.mubr.f32.mxu0 0.0
        %1823 = vmatmul.mubr.f32.gmra.mrb[0].mxu0 %v554
        %v1824 = vpop.f32.mrb[0].mxu0
        %v1825 = vadd.f32 %v497, %v1824
        %v1826 = vpop.f32.mrb[0].mxu0
        %v1827 = vadd.f32 %v497, %v1826
        %1828 = vmatprep.mubr.f32.mxu0 0.0
        %1829 = vmatmul.mubr.f32.gmra.mrb[0].mxu0 %v557
        %v1830 = vpop.f32.mrb[0].mxu0
        %v1831 = vadd.f32 %v502, %v1830
        %v1832 = vpop.f32.mrb[0].mxu0
        %v1833 = vadd.f32 %v502, %v1832
        %1834 = vmatprep.mubr.f32.mxu0 0.0
        %1835 = vmatmul.mubr.f32.gmra.mrb[0].mxu0 %v560
        %v1836 = vpop.f32.mrb[0].mxu0
        %v1837 = vadd.f32 %v507, %v1836
        %v1838 = vpop.f32.mrb[0].mxu0
        %v1839 = vadd.f32 %v507, %v1838
        %1840 = vmatprep.mubr.f32.mxu0 0.0
        %1841 = vmatmul.mubr.f32.gmra.mrb[0].mxu0 %v563
        %v1842 = vpop.f32.mrb[0].mxu0
        %v1843 = vadd.f32 %v512, %v1842
        %v1844 = vpop.f32.mrb[0].mxu0
        %v1845 = vadd.f32 %v512, %v1844
        %1846 = vmatprep.mubr.f32.mxu0 0.0
        %1847 = vmatmul.mubr.f32.gmra.mrb[0].mxu0 %v566
        %v1848 = vpop.f32.mrb[0].mxu0
        %v1849 = vadd.f32 %v517, %v1848
        %v1850 = vpop.f32.mrb[0].mxu0
        %v1851 = vadd.f32 %v517, %v1850
        %1852 = vdwg.mxu0
        %v1853 = vmul.f32 %v1115, 0.2
        %v1854 = vmul.f32 %v1117, 0.2
        %v1855 = vmul.f32 %v1276, 0.2
        %v1856 = vmul.f32 %v1278, 0.2
        %v1857 = vmul.f32 %v1437, 0.2
        %v1858 = vmul.f32 %v1439, 0.2
        %v1859 = vmul.f32 %v1598, 0.2
        %v1860 = vmul.f32 %v1600, 0.2
        %v1861 = vmul.f32 %v1759, 0.2
        %v1862 = vmul.f32 %v1761, 0.2
        %v1863 = vmul.f32 %v1121, 0.2
        %v1864 = vmul.f32 %v1123, 0.2
        %v1865 = vmul.f32 %v1282, 0.2
        %v1866 = vmul.f32 %v1284, 0.2
        %v1867 = vmul.f32 %v1443, 0.2
        %v1868 = vmul.f32 %v1445, 0.2
        %v1869 = vmul.f32 %v1604, 0.2
        %v1870 = vmul.f32 %v1606, 0.2
        %v1871 = vmul.f32 %v1765, 0.2
        %v1872 = vmul.f32 %v1767, 0.2
        %v1873 = vmul.f32 %v1127, 0.2
        %v1874 = vmul.f32 %v1129, 0.2
        %v1875 = vmul.f32 %v1288, 0.2
        %v1876 = vmul.f32 %v1290, 0.2
        %v1877 = vmul.f32 %v1449, 0.2
        %v1878 = vmul.f32 %v1451, 0.2
        %v1879 = vmul.f32 %v1610, 0.2
        %v1880 = vmul.f32 %v1612, 0.2
        %v1881 = vmul.f32 %v1771, 0.2
        %v1882 = vmul.f32 %v1773, 0.2
        %v1883 = vmul.f32 %v1133, 0.2
        %v1884 = vmul.f32 %v1135, 0.2
        %v1885 = vmul.f32 %v1294, 0.2
        %v1886 = vmul.f32 %v1296, 0.2
        %v1887 = vmul.f32 %v1455, 0.2
        %v1888 = vmul.f32 %v1457, 0.2
        %v1889 = vmul.f32 %v1616, 0.2
        %v1890 = vmul.f32 %v1618, 0.2
        %v1891 = vmul.f32 %v1777, 0.2
        %v1892 = vmul.f32 %v1779, 0.2
        %v1893 = vmul.f32 %v1139, 0.2
        %v1894 = vmul.f32 %v1141, 0.2
        %v1895 = vmul.f32 %v1300, 0.2
        %v1896 = vmul.f32 %v1302, 0.2
        %v1897 = vmul.f32 %v1461, 0.2
        %v1898 = vmul.f32 %v1463, 0.2
        %v1899 = vmul.f32 %v1622, 0.2
        %v1900 = vmul.f32 %v1624, 0.2
        %v1901 = vmul.f32 %v1783, 0.2
        %v1902 = vmul.f32 %v1785, 0.2
        %v1903 = vmul.f32 %v1145, 0.2
        %v1904 = vmul.f32 %v1147, 0.2
        %v1905 = vmul.f32 %v1306, 0.2
        %v1906 = vmul.f32 %v1308, 0.2
        %v1907 = vmul.f32 %v1467, 0.2
        %v1908 = vmul.f32 %v1469, 0.2
        %v1909 = vmul.f32 %v1628, 0.2
        %v1910 = vmul.f32 %v1630, 0.2
        %v1911 = vmul.f32 %v1789, 0.2
        %v1912 = vmul.f32 %v1791, 0.2
        %v1913 = vmul.f32 %v1151, 0.2
        %v1914 = vmul.f32 %v1153, 0.2
        %v1915 = vmul.f32 %v1312, 0.2
        %v1916 = vmul.f32 %v1314, 0.2
        %v1917 = vmul.f32 %v1473, 0.2
        %v1918 = vmul.f32 %v1475, 0.2
        %v1919 = vmul.f32 %v1634, 0.2
        %v1920 = vmul.f32 %v1636, 0.2
        %v1921 = vmul.f32 %v1795, 0.2
        %v1922 = vmul.f32 %v1797, 0.2
        %v1923 = vmul.f32 %v1157, 0.2
        %v1924 = vmul.f32 %v1159, 0.2
        %v1925 = vmul.f32 %v1318, 0.2
        %v1926 = vmul.f32 %v1320, 0.2
        %v1927 = vmul.f32 %v1479, 0.2
        %v1928 = vmul.f32 %v1481, 0.2
        %v1929 = vmul.f32 %v1640, 0.2
        %v1930 = vmul.f32 %v1642, 0.2
        %v1931 = vmul.f32 %v1801, 0.2
        %v1932 = vmul.f32 %v1803, 0.2
        %v1933 = vmul.f32 %v1163, 0.2
        %v1934 = vmul.f32 %v1165, 0.2
        %v1935 = vmul.f32 %v1324, 0.2
        %v1936 = vmul.f32 %v1326, 0.2
        %v1937 = vmul.f32 %v1485, 0.2
        %v1938 = vmul.f32 %v1487, 0.2
        %v1939 = vmul.f32 %v1646, 0.2
        %v1940 = vmul.f32 %v1648, 0.2
        %v1941 = vmul.f32 %v1807, 0.2
        %v1942 = vmul.f32 %v1809, 0.2
        %v1943 = vmul.f32 %v1169, 0.2
        %v1944 = vmul.f32 %v1171, 0.2
        %v1945 = vmul.f32 %v1330, 0.2
        %v1946 = vmul.f32 %v1332, 0.2
        %v1947 = vmul.f32 %v1491, 0.2
        %v1948 = vmul.f32 %v1493, 0.2
        %v1949 = vmul.f32 %v1652, 0.2
        %v1950 = vmul.f32 %v1654, 0.2
        %v1951 = vmul.f32 %v1813, 0.2
        %v1952 = vmul.f32 %v1815, 0.2
        %v1953 = vmul.f32 %v1175, 0.2
        %v1954 = vmul.f32 %v1177, 0.2
        %v1955 = vmul.f32 %v1336, 0.2
        %v1956 = vmul.f32 %v1338, 0.2
        %v1957 = vmul.f32 %v1497, 0.2
        %v1958 = vmul.f32 %v1499, 0.2
        %v1959 = vmul.f32 %v1658, 0.2
        %v1960 = vmul.f32 %v1660, 0.2
        %v1961 = vmul.f32 %v1819, 0.2
        %v1962 = vmul.f32 %v1821, 0.2
        %v1963 = vmul.f32 %v1181, 0.2
        %v1964 = vmul.f32 %v1183, 0.2
        %v1965 = vmul.f32 %v1342, 0.2
        %v1966 = vmul.f32 %v1344, 0.2
        %v1967 = vmul.f32 %v1503, 0.2
        %v1968 = vmul.f32 %v1505, 0.2
        %v1969 = vmul.f32 %v1664, 0.2
        %v1970 = vmul.f32 %v1666, 0.2
        %v1971 = vmul.f32 %v1825, 0.2
        %v1972 = vmul.f32 %v1827, 0.2
        %v1973 = vmul.f32 %v1187, 0.2
        %v1974 = vmul.f32 %v1189, 0.2
        %v1975 = vmul.f32 %v1348, 0.2
        %v1976 = vmul.f32 %v1350, 0.2
        %v1977 = vmul.f32 %v1509, 0.2
        %v1978 = vmul.f32 %v1511, 0.2
        %v1979 = vmul.f32 %v1670, 0.2
        %v1980 = vmul.f32 %v1672, 0.2
        %v1981 = vmul.f32 %v1831, 0.2
        %v1982 = vmul.f32 %v1833, 0.2
        %v1983 = vmul.f32 %v1193, 0.2
        %v1984 = vmul.f32 %v1195, 0.2
        %v1985 = vmul.f32 %v1354, 0.2
        %v1986 = vmul.f32 %v1356, 0.2
        %v1987 = vmul.f32 %v1515, 0.2
        %v1988 = vmul.f32 %v1517, 0.2
        %v1989 = vmul.f32 %v1676, 0.2
        %v1990 = vmul.f32 %v1678, 0.2
        %v1991 = vmul.f32 %v1837, 0.2
        %v1992 = vmul.f32 %v1839, 0.2
        %v1993 = vmul.f32 %v1199, 0.2
        %v1994 = vmul.f32 %v1201, 0.2
        %v1995 = vmul.f32 %v1360, 0.2
        %v1996 = vmul.f32 %v1362, 0.2
        %v1997 = vmul.f32 %v1521, 0.2
        %v1998 = vmul.f32 %v1523, 0.2
        %v1999 = vmul.f32 %v1682, 0.2
        %v2000 = vmul.f32 %v1684, 0.2
        %v2001 = vmul.f32 %v1843, 0.2
        %v2002 = vmul.f32 %v1845, 0.2
        %v2003 = vmul.f32 %v1205, 0.2
        %v2004 = vmul.f32 %v1207, 0.2
        %v2005 = vmul.f32 %v1366, 0.2
        %v2006 = vmul.f32 %v1368, 0.2
        %v2007 = vmul.f32 %v1527, 0.2
        %v2008 = vmul.f32 %v1529, 0.2
        %v2009 = vmul.f32 %v1688, 0.2
        %v2010 = vmul.f32 %v1690, 0.2
        %v2011 = vmul.f32 %v1849, 0.2
        %v2012 = vmul.f32 %v1851, 0.2
        %v2013 = vmax.f32 %v1115, %v1853
        %v2014 = vmax.f32 %v1117, %v1854
        %v2015 = vmax.f32 %v1276, %v1855
        %v2016 = vmax.f32 %v1278, %v1856
        %v2017 = vmax.f32 %v1437, %v1857
        %v2018 = vmax.f32 %v1439, %v1858
        %v2019 = vmax.f32 %v1598, %v1859
        %v2020 = vmax.f32 %v1600, %v1860
        %v2021 = vmax.f32 %v1759, %v1861
        %v2022 = vmax.f32 %v1761, %v1862
        %v2023 = vmax.f32 %v1121, %v1863
        %v2024 = vmax.f32 %v1123, %v1864
        %v2025 = vmax.f32 %v1282, %v1865
        %v2026 = vmax.f32 %v1284, %v1866
        %v2027 = vmax.f32 %v1443, %v1867
        %v2028 = vmax.f32 %v1445, %v1868
        %v2029 = vmax.f32 %v1604, %v1869
        %v2030 = vmax.f32 %v1606, %v1870
        %v2031 = vmax.f32 %v1765, %v1871
        %v2032 = vmax.f32 %v1767, %v1872
        %v2033 = vmax.f32 %v1127, %v1873
        %v2034 = vmax.f32 %v1129, %v1874
        %v2035 = vmax.f32 %v1288, %v1875
        %v2036 = vmax.f32 %v1290, %v1876
        %v2037 = vmax.f32 %v1449, %v1877
        %v2038 = vmax.f32 %v1451, %v1878
        %v2039 = vmax.f32 %v1610, %v1879
        %v2040 = vmax.f32 %v1612, %v1880
        %v2041 = vmax.f32 %v1771, %v1881
        %v2042 = vmax.f32 %v1773, %v1882
        %v2043 = vmax.f32 %v1133, %v1883
        %v2044 = vmax.f32 %v1135, %v1884
        %v2045 = vmax.f32 %v1294, %v1885
        %v2046 = vmax.f32 %v1296, %v1886
        %v2047 = vmax.f32 %v1455, %v1887
        %v2048 = vmax.f32 %v1457, %v1888
        %v2049 = vmax.f32 %v1616, %v1889
        %v2050 = vmax.f32 %v1618, %v1890
        %v2051 = vmax.f32 %v1777, %v1891
        %v2052 = vmax.f32 %v1779, %v1892
        %v2053 = vmax.f32 %v1139, %v1893
        %v2054 = vmax.f32 %v1141, %v1894
        %v2055 = vmax.f32 %v1300, %v1895
        %v2056 = vmax.f32 %v1302, %v1896
        %v2057 = vmax.f32 %v1461, %v1897
        %v2058 = vmax.f32 %v1463, %v1898
        %v2059 = vmax.f32 %v1622, %v1899
        %v2060 = vmax.f32 %v1624, %v1900
        %v2061 = vmax.f32 %v1783, %v1901
        %v2062 = vmax.f32 %v1785, %v1902
        %v2063 = vmax.f32 %v1145, %v1903
        %v2064 = vmax.f32 %v1147, %v1904
        %v2065 = vmax.f32 %v1306, %v1905
        %v2066 = vmax.f32 %v1308, %v1906
        %v2067 = vmax.f32 %v1467, %v1907
        %v2068 = vmax.f32 %v1469, %v1908
        %v2069 = vmax.f32 %v1628, %v1909
        %v2070 = vmax.f32 %v1630, %v1910
        %v2071 = vmax.f32 %v1789, %v1911
        %v2072 = vmax.f32 %v1791, %v1912
        %v2073 = vmax.f32 %v1151, %v1913
        %v2074 = vmax.f32 %v1153, %v1914
        %v2075 = vmax.f32 %v1312, %v1915
        %v2076 = vmax.f32 %v1314, %v1916
        %v2077 = vmax.f32 %v1473, %v1917
        %v2078 = vmax.f32 %v1475, %v1918
        %v2079 = vmax.f32 %v1634, %v1919
        %v2080 = vmax.f32 %v1636, %v1920
        %v2081 = vmax.f32 %v1795, %v1921
        %v2082 = vmax.f32 %v1797, %v1922
        %v2083 = vmax.f32 %v1157, %v1923
        %v2084 = vmax.f32 %v1159, %v1924
        %v2085 = vmax.f32 %v1318, %v1925
        %v2086 = vmax.f32 %v1320, %v1926
        %v2087 = vmax.f32 %v1479, %v1927
        %v2088 = vmax.f32 %v1481, %v1928
        %v2089 = vmax.f32 %v1640, %v1929
        %v2090 = vmax.f32 %v1642, %v1930
        %v2091 = vmax.f32 %v1801, %v1931
        %v2092 = vmax.f32 %v1803, %v1932
        %v2093 = vmax.f32 %v1163, %v1933
        %v2094 = vmax.f32 %v1165, %v1934
        %v2095 = vmax.f32 %v1324, %v1935
        %v2096 = vmax.f32 %v1326, %v1936
        %v2097 = vmax.f32 %v1485, %v1937
        %v2098 = vmax.f32 %v1487, %v1938
        %v2099 = vmax.f32 %v1646, %v1939
        %v2100 = vmax.f32 %v1648, %v1940
        %v2101 = vmax.f32 %v1807, %v1941
        %v2102 = vmax.f32 %v1809, %v1942
        %v2103 = vmax.f32 %v1169, %v1943
        %v2104 = vmax.f32 %v1171, %v1944
        %v2105 = vmax.f32 %v1330, %v1945
        %v2106 = vmax.f32 %v1332, %v1946
        %v2107 = vmax.f32 %v1491, %v1947
        %v2108 = vmax.f32 %v1493, %v1948
        %v2109 = vmax.f32 %v1652, %v1949
        %v2110 = vmax.f32 %v1654, %v1950
        %v2111 = vmax.f32 %v1813, %v1951
        %v2112 = vmax.f32 %v1815, %v1952
        %v2113 = vmax.f32 %v1175, %v1953
        %v2114 = vmax.f32 %v1177, %v1954
        %v2115 = vmax.f32 %v1336, %v1955
        %v2116 = vmax.f32 %v1338, %v1956
        %v2117 = vmax.f32 %v1497, %v1957
        %v2118 = vmax.f32 %v1499, %v1958
        %v2119 = vmax.f32 %v1658, %v1959
        %v2120 = vmax.f32 %v1660, %v1960
        %v2121 = vmax.f32 %v1819, %v1961
        %v2122 = vmax.f32 %v1821, %v1962
        %v2123 = vmax.f32 %v1181, %v1963
        %v2124 = vmax.f32 %v1183, %v1964
        %v2125 = vmax.f32 %v1342, %v1965
        %v2126 = vmax.f32 %v1344, %v1966
        %v2127 = vmax.f32 %v1503, %v1967
        %v2128 = vmax.f32 %v1505, %v1968
        %v2129 = vmax.f32 %v1664, %v1969
        %v2130 = vmax.f32 %v1666, %v1970
        %v2131 = vmax.f32 %v1825, %v1971
        %v2132 = vmax.f32 %v1827, %v1972
        %v2133 = vmax.f32 %v1187, %v1973
        %v2134 = vmax.f32 %v1189, %v1974
        %v2135 = vmax.f32 %v1348, %v1975
        %v2136 = vmax.f32 %v1350, %v1976
        %v2137 = vmax.f32 %v1509, %v1977
        %v2138 = vmax.f32 %v1511, %v1978
        %v2139 = vmax.f32 %v1670, %v1979
        %v2140 = vmax.f32 %v1672, %v1980
        %v2141 = vmax.f32 %v1831, %v1981
        %v2142 = vmax.f32 %v1833, %v1982
        %v2143 = vmax.f32 %v1193, %v1983
        %v2144 = vmax.f32 %v1195, %v1984
        %v2145 = vmax.f32 %v1354, %v1985
        %v2146 = vmax.f32 %v1356, %v1986
        %v2147 = vmax.f32 %v1515, %v1987
        %v2148 = vmax.f32 %v1517, %v1988
        %v2149 = vmax.f32 %v1676, %v1989
        %v2150 = vmax.f32 %v1678, %v1990
        %v2151 = vmax.f32 %v1837, %v1991
        %v2152 = vmax.f32 %v1839, %v1992
        %v2153 = vmax.f32 %v1199, %v1993
        %v2154 = vmax.f32 %v1201, %v1994
        %v2155 = vmax.f32 %v1360, %v1995
        %v2156 = vmax.f32 %v1362, %v1996
        %v2157 = vmax.f32 %v1521, %v1997
        %v2158 = vmax.f32 %v1523, %v1998
        %v2159 = vmax.f32 %v1682, %v1999
        %v2160 = vmax.f32 %v1684, %v2000
        %v2161 = vmax.f32 %v1843, %v2001
        %v2162 = vmax.f32 %v1845, %v2002
        %v2163 = vmax.f32 %v1205, %v2003
        %v2164 = vmax.f32 %v1207, %v2004
        %v2165 = vmax.f32 %v1366, %v2005
        %v2166 = vmax.f32 %v1368, %v2006
        %v2167 = vmax.f32 %v1527, %v2007
        %v2168 = vmax.f32 %v1529, %v2008
        %v2169 = vmax.f32 %v1688, %v2009
        %v2170 = vmax.f32 %v1690, %v2010
        %v2171 = vmax.f32 %v1849, %v2011
        %v2172 = vmax.f32 %v1851, %v2012
        %v2173 = vld [vmem:[%s3] sm:$0xff]
        %v2174 = vld [vmem:[%s3 + $0x8] sm:$0xff]
        %v2175 = vld [vmem:[%s3 + $0x10] sm:$0xff]
        %v2176 = vld [vmem:[%s3 + $0x18] sm:$0xff]
        %v2177 = vld [vmem:[%s3 + $0x20] sm:$0xff]
        %v2178 = vld [vmem:[%s3 + $0x28] sm:$0xff]
        %v2179 = vld [vmem:[%s3 + $0x30] sm:$0xff]
        %v2180 = vld [vmem:[%s3 + $0x38] sm:$0xff]
        %v2181 = vld [vmem:[%s3 + $0x40] sm:$0xff]
        %v2182 = vld [vmem:[%s3 + $0x48] sm:$0xff]
        %v2183 = vld [vmem:[%s3 + $0x50] sm:$0xff]
        %v2184 = vld [vmem:[%s3 + $0x58] sm:$0xff]
        %v2185 = vld [vmem:[%s3 + $0x60] sm:$0xff]
        %v2186 = vld [vmem:[%s3 + $0x68] sm:$0xff]
        %v2187 = vld [vmem:[%s3 + $0x70] sm:$0xff]
        %v2188 = vld [vmem:[%s3 + $0x78] sm:$0xff]
        %2190 = vset.pattern.permute.xlu0 0
        %2191 = vperm.xlu0 %2190, %v2173
        %v2192 = vpop.permute.xlu0 %2191
        %2195 = vset.pattern.permute.xlu0 0
        %2196 = vperm.xlu0 %2195, %v2174
        %v2197 = vpop.permute.xlu0 %2196
        %2200 = vset.pattern.permute.xlu0 0
        %2201 = vperm.xlu0 %2200, %v2175
        %v2202 = vpop.permute.xlu0 %2201
        %2205 = vset.pattern.permute.xlu0 0
        %2206 = vperm.xlu0 %2205, %v2176
        %v2207 = vpop.permute.xlu0 %2206
        %2210 = vset.pattern.permute.xlu0 0
        %2211 = vperm.xlu0 %2210, %v2177
        %v2212 = vpop.permute.xlu0 %2211
        %2215 = vset.pattern.permute.xlu0 0
        %2216 = vperm.xlu0 %2215, %v2178
        %v2217 = vpop.permute.xlu0 %2216
        %2220 = vset.pattern.permute.xlu0 0
        %2221 = vperm.xlu0 %2220, %v2179
        %v2222 = vpop.permute.xlu0 %2221
        %2225 = vset.pattern.permute.xlu0 0
        %2226 = vperm.xlu0 %2225, %v2180
        %v2227 = vpop.permute.xlu0 %2226
        %2230 = vset.pattern.permute.xlu0 0
        %2231 = vperm.xlu0 %2230, %v2181
        %v2232 = vpop.permute.xlu0 %2231
        %2235 = vset.pattern.permute.xlu0 0
        %2236 = vperm.xlu0 %2235, %v2182
        %v2237 = vpop.permute.xlu0 %2236
        %2240 = vset.pattern.permute.xlu0 0
        %2241 = vperm.xlu0 %2240, %v2183
        %v2242 = vpop.permute.xlu0 %2241
        %2245 = vset.pattern.permute.xlu0 0
        %2246 = vperm.xlu0 %2245, %v2184
        %v2247 = vpop.permute.xlu0 %2246
        %2250 = vset.pattern.permute.xlu0 0
        %2251 = vperm.xlu0 %2250, %v2185
        %v2252 = vpop.permute.xlu0 %2251
        %2255 = vset.pattern.permute.xlu0 0
        %2256 = vperm.xlu0 %2255, %v2186
        %v2257 = vpop.permute.xlu0 %2256
        %2260 = vset.pattern.permute.xlu0 0
        %2261 = vperm.xlu0 %2260, %v2187
        %v2262 = vpop.permute.xlu0 %2261
        %2265 = vset.pattern.permute.xlu0 0
        %2266 = vperm.xlu0 %2265, %v2188
        %v2267 = vpop.permute.xlu0 %2266
        %v2269 = vmul.f32 %v2013, %v2192
        %v2270 = vmul.f32 %v2014, %v2192
        %v2271 = vmul.f32 %v2015, %v2192
        %v2272 = vmul.f32 %v2016, %v2192
        %v2273 = vmul.f32 %v2017, %v2192
        %v2274 = vmul.f32 %v2018, %v2192
        %v2275 = vmul.f32 %v2019, %v2192
        %v2276 = vmul.f32 %v2020, %v2192
        %v2277 = vmul.f32 %v2021, %v2192
        %v2278 = vmul.f32 %v2022, %v2192
        %v2279 = vmul.f32 %v2023, %v2197
        %v2280 = vmul.f32 %v2024, %v2197
        %v2281 = vmul.f32 %v2025, %v2197
        %v2282 = vmul.f32 %v2026, %v2197
        %v2283 = vmul.f32 %v2027, %v2197
        %v2284 = vmul.f32 %v2028, %v2197
        %v2285 = vmul.f32 %v2029, %v2197
        %v2286 = vmul.f32 %v2030, %v2197
        %v2287 = vmul.f32 %v2031, %v2197
        %v2288 = vmul.f32 %v2032, %v2197
        %v2289 = vmul.f32 %v2033, %v2202
        %v2290 = vmul.f32 %v2034, %v2202
        %v2291 = vmul.f32 %v2035, %v2202
        %v2292 = vmul.f32 %v2036, %v2202
        %v2293 = vmul.f32 %v2037, %v2202
        %v2294 = vmul.f32 %v2038, %v2202
        %v2295 = vmul.f32 %v2039, %v2202
        %v2296 = vmul.f32 %v2040, %v2202
        %v2297 = vmul.f32 %v2041, %v2202
        %v2298 = vmul.f32 %v2042, %v2202
        %v2299 = vmul.f32 %v2043, %v2207
        %v2300 = vmul.f32 %v2044, %v2207
        %v2301 = vmul.f32 %v2045, %v2207
        %v2302 = vmul.f32 %v2046, %v2207
        %v2303 = vmul.f32 %v2047, %v2207
        %v2304 = vmul.f32 %v2048, %v2207
        %v2305 = vmul.f32 %v2049, %v2207
        %v2306 = vmul.f32 %v2050, %v2207
        %v2307 = vmul.f32 %v2051, %v2207
        %v2308 = vmul.f32 %v2052, %v2207
        %v2309 = vmul.f32 %v2053, %v2212
        %v2310 = vmul.f32 %v2054, %v2212
        %v2311 = vmul.f32 %v2055, %v2212
        %v2312 = vmul.f32 %v2056, %v2212
        %v2313 = vmul.f32 %v2057, %v2212
        %v2314 = vmul.f32 %v2058, %v2212
        %v2315 = vmul.f32 %v2059, %v2212
        %v2316 = vmul.f32 %v2060, %v2212
        %v2317 = vmul.f32 %v2061, %v2212
        %v2318 = vmul.f32 %v2062, %v2212
        %v2319 = vmul.f32 %v2063, %v2217
        %v2320 = vmul.f32 %v2064, %v2217
        %v2321 = vmul.f32 %v2065, %v2217
        %v2322 = vmul.f32 %v2066, %v2217
        %v2323 = vmul.f32 %v2067, %v2217
        %v2324 = vmul.f32 %v2068, %v2217
        %v2325 = vmul.f32 %v2069, %v2217
        %v2326 = vmul.f32 %v2070, %v2217
        %v2327 = vmul.f32 %v2071, %v2217
        %v2328 = vmul.f32 %v2072, %v2217
        %v2329 = vmul.f32 %v2073, %v2222
        %v2330 = vmul.f32 %v2074, %v2222
        %v2331 = vmul.f32 %v2075, %v2222
        %v2332 = vmul.f32 %v2076, %v2222
        %v2333 = vmul.f32 %v2077, %v2222
        %v2334 = vmul.f32 %v2078, %v2222
        %v2335 = vmul.f32 %v2079, %v2222
        %v2336 = vmul.f32 %v2080, %v2222
        %v2337 = vmul.f32 %v2081, %v2222
        %v2338 = vmul.f32 %v2082, %v2222
        %v2339 = vmul.f32 %v2083, %v2227
        %v2340 = vmul.f32 %v2084, %v2227
        %v2341 = vmul.f32 %v2085, %v2227
        %v2342 = vmul.f32 %v2086, %v2227
        %v2343 = vmul.f32 %v2087, %v2227
        %v2344 = vmul.f32 %v2088, %v2227
        %v2345 = vmul.f32 %v2089, %v2227
        %v2346 = vmul.f32 %v2090, %v2227
        %v2347 = vmul.f32 %v2091, %v2227
        %v2348 = vmul.f32 %v2092, %v2227
        %v2349 = vmul.f32 %v2093, %v2232
        %v2350 = vmul.f32 %v2094, %v2232
        %v2351 = vmul.f32 %v2095, %v2232
        %v2352 = vmul.f32 %v2096, %v2232
        %v2353 = vmul.f32 %v2097, %v2232
        %v2354 = vmul.f32 %v2098, %v2232
        %v2355 = vmul.f32 %v2099, %v2232
        %v2356 = vmul.f32 %v2100, %v2232
        %v2357 = vmul.f32 %v2101, %v2232
        %v2358 = vmul.f32 %v2102, %v2232
        %v2359 = vmul.f32 %v2103, %v2237
        %v2360 = vmul.f32 %v2104, %v2237
        %v2361 = vmul.f32 %v2105, %v2237
        %v2362 = vmul.f32 %v2106, %v2237
        %v2363 = vmul.f32 %v2107, %v2237
        %v2364 = vmul.f32 %v2108, %v2237
        %v2365 = vmul.f32 %v2109, %v2237
        %v2366 = vmul.f32 %v2110, %v2237
        %v2367 = vmul.f32 %v2111, %v2237
        %v2368 = vmul.f32 %v2112, %v2237
        %v2369 = vmul.f32 %v2113, %v2242
        %v2370 = vmul.f32 %v2114, %v2242
        %v2371 = vmul.f32 %v2115, %v2242
        %v2372 = vmul.f32 %v2116, %v2242
        %v2373 = vmul.f32 %v2117, %v2242
        %v2374 = vmul.f32 %v2118, %v2242
        %v2375 = vmul.f32 %v2119, %v2242
        %v2376 = vmul.f32 %v2120, %v2242
        %v2377 = vmul.f32 %v2121, %v2242
        %v2378 = vmul.f32 %v2122, %v2242
        %v2379 = vmul.f32 %v2123, %v2247
        %v2380 = vmul.f32 %v2124, %v2247
        %v2381 = vmul.f32 %v2125, %v2247
        %v2382 = vmul.f32 %v2126, %v2247
        %v2383 = vmul.f32 %v2127, %v2247
        %v2384 = vmul.f32 %v2128, %v2247
        %v2385 = vmul.f32 %v2129, %v2247
        %v2386 = vmul.f32 %v2130, %v2247
        %v2387 = vmul.f32 %v2131, %v2247
        %v2388 = vmul.f32 %v2132, %v2247
        %v2389 = vmul.f32 %v2133, %v2252
        %v2390 = vmul.f32 %v2134, %v2252
        %v2391 = vmul.f32 %v2135, %v2252
        %v2392 = vmul.f32 %v2136, %v2252
        %v2393 = vmul.f32 %v2137, %v2252
        %v2394 = vmul.f32 %v2138, %v2252
        %v2395 = vmul.f32 %v2139, %v2252
        %v2396 = vmul.f32 %v2140, %v2252
        %v2397 = vmul.f32 %v2141, %v2252
        %v2398 = vmul.f32 %v2142, %v2252
        %v2399 = vmul.f32 %v2143, %v2257
        %v2400 = vmul.f32 %v2144, %v2257
        %v2401 = vmul.f32 %v2145, %v2257
        %v2402 = vmul.f32 %v2146, %v2257
        %v2403 = vmul.f32 %v2147, %v2257
        %v2404 = vmul.f32 %v2148, %v2257
        %v2405 = vmul.f32 %v2149, %v2257
        %v2406 = vmul.f32 %v2150, %v2257
        %v2407 = vmul.f32 %v2151, %v2257
        %v2408 = vmul.f32 %v2152, %v2257
        %v2409 = vmul.f32 %v2153, %v2262
        %v2410 = vmul.f32 %v2154, %v2262
        %v2411 = vmul.f32 %v2155, %v2262
        %v2412 = vmul.f32 %v2156, %v2262
        %v2413 = vmul.f32 %v2157, %v2262
        %v2414 = vmul.f32 %v2158, %v2262
        %v2415 = vmul.f32 %v2159, %v2262
        %v2416 = vmul.f32 %v2160, %v2262
        %v2417 = vmul.f32 %v2161, %v2262
        %v2418 = vmul.f32 %v2162, %v2262
        %v2419 = vmul.f32 %v2163, %v2267
        %v2420 = vmul.f32 %v2164, %v2267
        %v2421 = vmul.f32 %v2165, %v2267
        %v2422 = vmul.f32 %v2166, %v2267
        %v2423 = vmul.f32 %v2167, %v2267
        %v2424 = vmul.f32 %v2168, %v2267
        %v2425 = vmul.f32 %v2169, %v2267
        %v2426 = vmul.f32 %v2170, %v2267
        %v2427 = vmul.f32 %v2171, %v2267
        %v2428 = vmul.f32 %v2172, %v2267
        %v2429 = vadd.f32 %v2269, %v2279
        %v2430 = vadd.f32 %v2429, %v2289
        %v2431 = vadd.f32 %v2430, %v2299
        %v2432 = vadd.f32 %v2431, %v2309
        %v2433 = vadd.f32 %v2432, %v2319
        %v2434 = vadd.f32 %v2433, %v2329
        %v2435 = vadd.f32 %v2434, %v2339
        %v2436 = vadd.f32 %v2435, %v2349
        %v2437 = vadd.f32 %v2436, %v2359
        %v2438 = vadd.f32 %v2437, %v2369
        %v2439 = vadd.f32 %v2438, %v2379
        %v2440 = vadd.f32 %v2439, %v2389
        %v2441 = vadd.f32 %v2440, %v2399
        %v2442 = vadd.f32 %v2441, %v2409
        %v2443 = vadd.f32 %v2442, %v2419
        %v2444 = vrot.slane %v2443, 4
        %v2445 = vadd.f32 %v2443, %v2444
        %v2446 = vrot.slane %v2445, 2
        %v2447 = vadd.f32 %v2445, %v2446
        %v2448 = vrot.slane %v2447, 1
        %v2449 = vadd.f32 %v2447, %v2448
        %v2450 = vadd.f32 %v2270, %v2280
        %v2451 = vadd.f32 %v2450, %v2290
        %v2452 = vadd.f32 %v2451, %v2300
        %v2453 = vadd.f32 %v2452, %v2310
        %v2454 = vadd.f32 %v2453, %v2320
        %v2455 = vadd.f32 %v2454, %v2330
        %v2456 = vadd.f32 %v2455, %v2340
        %v2457 = vadd.f32 %v2456, %v2350
        %v2458 = vadd.f32 %v2457, %v2360
        %v2459 = vadd.f32 %v2458, %v2370
        %v2460 = vadd.f32 %v2459, %v2380
        %v2461 = vadd.f32 %v2460, %v2390
        %v2462 = vadd.f32 %v2461, %v2400
        %v2463 = vadd.f32 %v2462, %v2410
        %v2464 = vadd.f32 %v2463, %v2420
        %v2465 = vrot.slane %v2464, 4
        %v2466 = vadd.f32 %v2464, %v2465
        %v2467 = vrot.slane %v2466, 2
        %v2468 = vadd.f32 %v2466, %v2467
        %v2469 = vrot.slane %v2468, 1
        %v2470 = vadd.f32 %v2468, %v2469
        %v2471 = vadd.f32 %v2271, %v2281
        %v2472 = vadd.f32 %v2471, %v2291
        %v2473 = vadd.f32 %v2472, %v2301
        %v2474 = vadd.f32 %v2473, %v2311
        %v2475 = vadd.f32 %v2474, %v2321
        %v2476 = vadd.f32 %v2475, %v2331
        %v2477 = vadd.f32 %v2476, %v2341
        %v2478 = vadd.f32 %v2477, %v2351
        %v2479 = vadd.f32 %v2478, %v2361
        %v2480 = vadd.f32 %v2479, %v2371
        %v2481 = vadd.f32 %v2480, %v2381
        %v2482 = vadd.f32 %v2481, %v2391
        %v2483 = vadd.f32 %v2482, %v2401
        %v2484 = vadd.f32 %v2483, %v2411
        %v2485 = vadd.f32 %v2484, %v2421
        %v2486 = vrot.slane %v2485, 4
        %v2487 = vadd.f32 %v2485, %v2486
        %v2488 = vrot.slane %v2487, 2
        %v2489 = vadd.f32 %v2487, %v2488
        %v2490 = vrot.slane %v2489, 1
        %v2491 = vadd.f32 %v2489, %v2490
        %v2492 = vadd.f32 %v2272, %v2282
        %v2493 = vadd.f32 %v2492, %v2292
        %v2494 = vadd.f32 %v2493, %v2302
        %v2495 = vadd.f32 %v2494, %v2312
        %v2496 = vadd.f32 %v2495, %v2322
        %v2497 = vadd.f32 %v2496, %v2332
        %v2498 = vadd.f32 %v2497, %v2342
        %v2499 = vadd.f32 %v2498, %v2352
        %v2500 = vadd.f32 %v2499, %v2362
        %v2501 = vadd.f32 %v2500, %v2372
        %v2502 = vadd.f32 %v2501, %v2382
        %v2503 = vadd.f32 %v2502, %v2392
        %v2504 = vadd.f32 %v2503, %v2402
        %v2505 = vadd.f32 %v2504, %v2412
        %v2506 = vadd.f32 %v2505, %v2422
        %v2507 = vrot.slane %v2506, 4
        %v2508 = vadd.f32 %v2506, %v2507
        %v2509 = vrot.slane %v2508, 2
        %v2510 = vadd.f32 %v2508, %v2509
        %v2511 = vrot.slane %v2510, 1
        %v2512 = vadd.f32 %v2510, %v2511
        %v2513 = vadd.f32 %v2273, %v2283
        %v2514 = vadd.f32 %v2513, %v2293
        %v2515 = vadd.f32 %v2514, %v2303
        %v2516 = vadd.f32 %v2515, %v2313
        %v2517 = vadd.f32 %v2516, %v2323
        %v2518 = vadd.f32 %v2517, %v2333
        %v2519 = vadd.f32 %v2518, %v2343
        %v2520 = vadd.f32 %v2519, %v2353
        %v2521 = vadd.f32 %v2520, %v2363
        %v2522 = vadd.f32 %v2521, %v2373
        %v2523 = vadd.f32 %v2522, %v2383
        %v2524 = vadd.f32 %v2523, %v2393
        %v2525 = vadd.f32 %v2524, %v2403
        %v2526 = vadd.f32 %v2525, %v2413
        %v2527 = vadd.f32 %v2526, %v2423
        %v2528 = vrot.slane %v2527, 4
        %v2529 = vadd.f32 %v2527, %v2528
        %v2530 = vrot.slane %v2529, 2
        %v2531 = vadd.f32 %v2529, %v2530
        %v2532 = vrot.slane %v2531, 1
        %v2533 = vadd.f32 %v2531, %v2532
        %v2534 = vadd.f32 %v2274, %v2284
        %v2535 = vadd.f32 %v2534, %v2294
        %v2536 = vadd.f32 %v2535, %v2304
        %v2537 = vadd.f32 %v2536, %v2314
        %v2538 = vadd.f32 %v2537, %v2324
        %v2539 = vadd.f32 %v2538, %v2334
        %v2540 = vadd.f32 %v2539, %v2344
        %v2541 = vadd.f32 %v2540, %v2354
        %v2542 = vadd.f32 %v2541, %v2364
        %v2543 = vadd.f32 %v2542, %v2374
        %v2544 = vadd.f32 %v2543, %v2384
        %v2545 = vadd.f32 %v2544, %v2394
        %v2546 = vadd.f32 %v2545, %v2404
        %v2547 = vadd.f32 %v2546, %v2414
        %v2548 = vadd.f32 %v2547, %v2424
        %v2549 = vrot.slane %v2548, 4
        %v2550 = vadd.f32 %v2548, %v2549
        %v2551 = vrot.slane %v2550, 2
        %v2552 = vadd.f32 %v2550, %v2551
        %v2553 = vrot.slane %v2552, 1
        %v2554 = vadd.f32 %v2552, %v2553
        %v2555 = vadd.f32 %v2275, %v2285
        %v2556 = vadd.f32 %v2555, %v2295
        %v2557 = vadd.f32 %v2556, %v2305
        %v2558 = vadd.f32 %v2557, %v2315
        %v2559 = vadd.f32 %v2558, %v2325
        %v2560 = vadd.f32 %v2559, %v2335
        %v2561 = vadd.f32 %v2560, %v2345
        %v2562 = vadd.f32 %v2561, %v2355
        %v2563 = vadd.f32 %v2562, %v2365
        %v2564 = vadd.f32 %v2563, %v2375
        %v2565 = vadd.f32 %v2564, %v2385
        %v2566 = vadd.f32 %v2565, %v2395
        %v2567 = vadd.f32 %v2566, %v2405
        %v2568 = vadd.f32 %v2567, %v2415
        %v2569 = vadd.f32 %v2568, %v2425
        %v2570 = vrot.slane %v2569, 4
        %v2571 = vadd.f32 %v2569, %v2570
        %v2572 = vrot.slane %v2571, 2
        %v2573 = vadd.f32 %v2571, %v2572
        %v2574 = vrot.slane %v2573, 1
        %v2575 = vadd.f32 %v2573, %v2574
        %v2576 = vadd.f32 %v2276, %v2286
        %v2577 = vadd.f32 %v2576, %v2296
        %v2578 = vadd.f32 %v2577, %v2306
        %v2579 = vadd.f32 %v2578, %v2316
        %v2580 = vadd.f32 %v2579, %v2326
        %v2581 = vadd.f32 %v2580, %v2336
        %v2582 = vadd.f32 %v2581, %v2346
        %v2583 = vadd.f32 %v2582, %v2356
        %v2584 = vadd.f32 %v2583, %v2366
        %v2585 = vadd.f32 %v2584, %v2376
        %v2586 = vadd.f32 %v2585, %v2386
        %v2587 = vadd.f32 %v2586, %v2396
        %v2588 = vadd.f32 %v2587, %v2406
        %v2589 = vadd.f32 %v2588, %v2416
        %v2590 = vadd.f32 %v2589, %v2426
        %v2591 = vrot.slane %v2590, 4
        %v2592 = vadd.f32 %v2590, %v2591
        %v2593 = vrot.slane %v2592, 2
        %v2594 = vadd.f32 %v2592, %v2593
        %v2595 = vrot.slane %v2594, 1
        %v2596 = vadd.f32 %v2594, %v2595
        %v2597 = vadd.f32 %v2277, %v2287
        %v2598 = vadd.f32 %v2597, %v2297
        %v2599 = vadd.f32 %v2598, %v2307
        %v2600 = vadd.f32 %v2599, %v2317
        %v2601 = vadd.f32 %v2600, %v2327
        %v2602 = vadd.f32 %v2601, %v2337
        %v2603 = vadd.f32 %v2602, %v2347
        %v2604 = vadd.f32 %v2603, %v2357
        %v2605 = vadd.f32 %v2604, %v2367
        %v2606 = vadd.f32 %v2605, %v2377
        %v2607 = vadd.f32 %v2606, %v2387
        %v2608 = vadd.f32 %v2607, %v2397
        %v2609 = vadd.f32 %v2608, %v2407
        %v2610 = vadd.f32 %v2609, %v2417
        %v2611 = vadd.f32 %v2610, %v2427
        %v2612 = vrot.slane %v2611, 4
        %v2613 = vadd.f32 %v2611, %v2612
        %v2614 = vrot.slane %v2613, 2
        %v2615 = vadd.f32 %v2613, %v2614
        %v2616 = vrot.slane %v2615, 1
        %v2617 = vadd.f32 %v2615, %v2616
        %v2618 = vadd.f32 %v2278, %v2288
        %v2619 = vadd.f32 %v2618, %v2298
        %v2620 = vadd.f32 %v2619, %v2308
        %v2621 = vadd.f32 %v2620, %v2318
        %v2622 = vadd.f32 %v2621, %v2328
        %v2623 = vadd.f32 %v2622, %v2338
        %v2624 = vadd.f32 %v2623, %v2348
        %v2625 = vadd.f32 %v2624, %v2358
        %v2626 = vadd.f32 %v2625, %v2368
        %v2627 = vadd.f32 %v2626, %v2378
        %v2628 = vadd.f32 %v2627, %v2388
        %v2629 = vadd.f32 %v2628, %v2398
        %v2630 = vadd.f32 %v2629, %v2408
        %v2631 = vadd.f32 %v2630, %v2418
        %v2632 = vadd.f32 %v2631, %v2428
        %v2633 = vrot.slane %v2632, 4
        %v2634 = vadd.f32 %v2632, %v2633
        %v2635 = vrot.slane %v2634, 2
        %v2636 = vadd.f32 %v2634, %v2635
        %v2637 = vrot.slane %v2636, 1
        %v2638 = vadd.f32 %v2636, %v2637
        %s2639 = sld [smem:[#allocation2]]
        %v2640 = vstv %s2639
        %v2641 = vadd.f32 %v2449, %v2640
        %v2642 = vadd.f32 %v2470, %v2640
        %v2643 = vadd.f32 %v2491, %v2640
        %v2644 = vadd.f32 %v2512, %v2640
        %v2645 = vadd.f32 %v2533, %v2640
        %v2646 = vadd.f32 %v2554, %v2640
        %v2647 = vadd.f32 %v2575, %v2640
        %v2648 = vadd.f32 %v2596, %v2640
        %v2649 = vadd.f32 %v2617, %v2640
        %v2650 = vadd.f32 %v2638, %v2640
        %v2661 = vcombine.low %v2641, %v2642
        %v2662 = vcombine.low %v2643, %v2644
        %v2663 = vcombine.low %v2645, %v2646
        %v2664 = vcombine.low %v2647, %v2648
        %v2666 = vunpack.c.l.s4 1966171168
        %v2667 = vunpack.c.0.s8 %v2666
        %v2668 = vlaneseq
        %v2669 = vshrl.u32 %v2668, 7
        %v2670 = vsub.s32 %v2667, %v2669
        %v2671 = vrot.slane %v2661, %v2670
        %v2673 = vunpack.c.l.s4 1966171168
        %v2674 = vunpack.c.0.s8 %v2673
        %v2675 = vlaneseq
        %v2676 = vshrl.u32 %v2675, 7
        %v2677 = vsub.s32 %v2674, %v2676
        %v2678 = vrot.slane %v2662, %v2677
        %v2680 = vunpack.c.l.s4 1966171168
        %v2681 = vunpack.c.0.s8 %v2680
        %v2682 = vlaneseq
        %v2683 = vshrl.u32 %v2682, 7
        %v2684 = vsub.s32 %v2681, %v2683
        %v2685 = vrot.slane %v2663, %v2684
        %v2687 = vunpack.c.l.s4 1966171168
        %v2688 = vunpack.c.0.s8 %v2687
        %v2689 = vlaneseq
        %v2690 = vshrl.u32 %v2689, 7
        %v2691 = vsub.s32 %v2688, %v2690
        %v2692 = vrot.slane %v2664, %v2691
        %v2693 = vcombine.low %v2671, %v2678
        %v2694 = vcombine.low %v2685, %v2692
        %v2696 = vunpack.c.l.s4 1966171168
        %v2697 = vunpack.c.0.s8 %v2696
        %v2698 = vlaneseq
        %v2699 = vshrl.u32 %v2698, 7
        %v2700 = vsub.s32 %v2697, %v2699
        %v2701 = vrot.slane %v2693, %v2700
        %v2703 = vunpack.c.l.s4 1966171168
        %v2704 = vunpack.c.0.s8 %v2703
        %v2705 = vlaneseq
        %v2706 = vshrl.u32 %v2705, 7
        %v2707 = vsub.s32 %v2704, %v2706
        %v2708 = vrot.slane %v2694, %v2707
        %v2709 = vcombine.low %v2701, %v2708
        %v2710 = vcombine.low %v2649, %v2650
        %v2712 = vunpack.c.l.s4 1966171168
        %v2713 = vunpack.c.0.s8 %v2712
        %v2714 = vlaneseq
        %v2715 = vshrl.u32 %v2714, 7
        %v2716 = vsub.s32 %v2713, %v2715
        %v2717 = vrot.slane %v2710, %v2716
        %v2719 = vunpack.c.l.s4 1966171168
        %v2720 = vunpack.c.0.s8 %v2719
        %v2721 = vlaneseq
        %v2722 = vshrl.u32 %v2721, 7
        %v2723 = vsub.s32 %v2720, %v2722
        %v2724 = vrot.slane %v2717, %v2723
        %2727 = vst [vmem:[%s231] sm:$0xff] %v2709
        %v2728 = vlaneseq
        %vm2729 = vcmp.ge.s32.totalorder %v2728, 0
        %vm2730 = vcmp.lt.s32.totalorder %v2728, 256
        %vm2731 = vmand %vm2729, %vm2730
        %2732 = vst.msk [vmem:[%s231 + $0x8] sm:$0x3] %vm2731, %v2724
        %s2733 = sand.u32 %s138, 1
        %s2734 = scalar_lea.sflag [#allocation4], %s2733
        %s2735 = sand.u32 %s138, 1
        %s2736 = smul.addr %s2735, 10
        %s2737 = scalar_lea.vmem [#allocation3], %s2736
        // Predicated region
        $region41: #{dis_embed_att_forward.1} parent=39 // pred_check
          %p2738 = pneg %p148
        $region42: #{dis_embed_att_forward.1} parent=39 // pred_check_branch
          %2740 = sbr.rel (%p2738) target = $region44
        $region43: #{dis_embed_att_forward.1} parent=39 // pred_region
          %s2741 = smul.u32 10, %s20
          %s2743 = ssub.s32 160, 160
          %2744 = vsyncadd %s2734, %s2743
          %s2745 = smul.addr %s2741, 16
          %s2746 = scalar_lea.hbm %s5, %s2745
          %s2748 = sshll.u32 %s2737, 4
          %s2749 = int_to_ptr.vmem [resolvable:$true] %s2748
          %2751 = dma.vmem_to_hbm [thread:$0]  %s2749, 160, %s2746, %s2734
        $region44: #{dis_embed_att_forward.1} parent=39 // pred_fallthru
          _
      $region40: #{dis_embed_att_forward.1} parent=5 // pred_fallthru
        _
      %p2752 = scmp.le.s32.totalorder 2, %s15
      // Predicated region
      $region45: #{dis_embed_att_forward.1} parent=5 // pred_check
        %p2753 = pneg %p2752
      $region46: #{dis_embed_att_forward.1} parent=5 // pred_check_branch
        %2755 = sbr.rel (%p2753) target = $region48
      $region47: #{dis_embed_att_forward.1} parent=5 // pred_region
        %s2756 = ssub.s32 %s15, 2
        // Predicated region
        $region49: #{dis_embed_att_forward.1} parent=47 // pred_check
          %p2757 = pneg %p154
        $region50: #{dis_embed_att_forward.1} parent=47 // pred_check_branch
          %2759 = sbr.rel (%p2757) target = $region52
        $region51: #{dis_embed_att_forward.1} parent=47 // pred_region
          %s2760 = sand.u32 %s139, 1
          %s2761 = scalar_lea.sflag [#allocation4], %s2760
          %s2762 = sand.u32 %s139, 1
          %s2763 = smul.addr %s2762, 10
          %s2764 = scalar_lea.vmem [#allocation3], %s2763
          %2765 = dma.done %s2761, 160
        $region52: #{dis_embed_att_forward.1} parent=47 // pred_fallthru
          _
      $region48: #{dis_embed_att_forward.1} parent=5 // pred_fallthru
        _
    $region6: #{dis_embed_att_forward.1} parent=1 // loop_footer
      %s19 = sadd.s32 1, %s15
    $region7: #{dis_embed_att_forward.1} parent=1 // loop_footer_branch
      %14 = sbr.rel target = $region3
    $region8: #{dis_embed_att_forward.1} parent=1 // loop_exit
      _
    %2766 = vsyncpa [#allocation4], 1
    %s2767 = scalar_lea.sflag [#allocation4], 1
    %2768 = vsyncpa %s2767, 1

</llo_original>
